<compile_context>
chip_gen: v5e
topology: v5e:2x2
jax: 0.10.0
libtpu: 0.0.40
codegen_flags: <defaults>
</compile_context>

<pallas_src>
import functools
import math

import jax
import jax.numpy as jnp
from jax.experimental import pallas as pl
from jax.experimental.pallas import tpu as pltpu


# ----------------------------- helpers -------------------------------------

def _pick_tile(dim, pref, align):
    """Largest tile <= pref that divides dim and is a multiple of align."""
    if dim <= pref:
        return dim
    t = (pref // align) * align
    while t >= align:
        if dim % t == 0:
            return t
        t -= align
    # TODO(synk): pad M/N/K in the wrapper (masked epilogue) instead of falling
    # back to the full dimension for awkward shapes.
    return dim


def _compiler_params(sem, est_bytes):
    """Dimension semantics + explicit scoped-VMEM limit with 2x headroom."""
    limit = int(min(max(2 * est_bytes, 4 * 1024 * 1024), 32 * 1024 * 1024))
    return pltpu.CompilerParams(dimension_semantics=sem, vmem_limit_bytes=limit)


def _layernorm(z, gamma, beta, eps):
    mu = jnp.mean(z, axis=-1, keepdims=True)
    var = jnp.mean(jnp.square(z - mu), axis=-1, keepdims=True)
    zn = (z - mu) * jax.lax.rsqrt(var + eps)
    return zn * gamma + beta


def _attend_head(q, k, v, mask):
    """One head: q[Sq,dh], k[Sk,dh], v[Sk,dh] (bf16), mask[Sq,Sk] (1 keep / 0 masked).

    The 1/sqrt(dh) scale is already folded into the Q projection weights.
    """
    s = jax.lax.dot_general(q, k, (((1,), (1,)), ((), ())),
                            preferred_element_type=jnp.float32)       # [Sq, Sk]
    s = jnp.where(mask == 0, jnp.float32(-1e9), s)
    s = s - jnp.max(s, axis=-1, keepdims=True)
    p = jnp.exp(s)
    p = p * pl.reciprocal(jnp.sum(p, axis=-1, keepdims=True), approx=True)  # EUP
    return jnp.dot(p.astype(jnp.bfloat16), v, preferred_element_type=jnp.float32)


# ----------------------------- Pallas kernels -------------------------------

def _matmul_bias_kernel(x_ref, w_ref, b_ref, o_ref, acc_ref):
    """Tiled (M,N,K) GEMM with bias; bf16 weights from HBM, f32 accumulation."""
    @pl.when(pl.program_id(2) == 0)
    def _():
        acc_ref[...] = jnp.zeros_like(acc_ref)

    acc_ref[...] += jnp.dot(x_ref[...].astype(jnp.bfloat16), w_ref[...],
                            preferred_element_type=jnp.float32)

    @pl.when(pl.program_id(2) == pl.num_programs(2) - 1)
    def _():
        o_ref[...] = (acc_ref[...] + b_ref[...]).astype(o_ref.dtype)


def _proj_residual_ln_kernel(h_ref, w_ref, b_ref, res_ref, g_ref, be_ref,
                             o_ref, acc_ref, *, eps):
    """out = LayerNorm(res + h @ W + b) — residual + LN fused into the GEMM epilogue."""
    k = pl.program_id(1)

    @pl.when(k == 0)
    def _():
        acc_ref[...] = jnp.zeros_like(acc_ref)

    acc_ref[...] += jnp.dot(h_ref[...].astype(jnp.bfloat16), w_ref[...],
                            preferred_element_type=jnp.float32)

    @pl.when(k == pl.num_programs(1) - 1)
    def _():
        z = acc_ref[...] + b_ref[...] + res_ref[...].astype(jnp.float32)
        o_ref[...] = _layernorm(z, g_ref[...], be_ref[...], eps).astype(o_ref.dtype)


def _ffn_residual_ln_kernel(x_ref, w1_ref, b1_ref, w2_ref, b2_ref, g_ref, be_ref,
                            o_ref, acc_ref, *, eps):
    """out = LayerNorm(x + relu(x@W1+b1)@W2 + b2), d_ff contraction tiled over grid axis 1."""
    f = pl.program_id(1)

    @pl.when(f == 0)
    def _():
        acc_ref[...] = jnp.zeros_like(acc_ref)

    x = x_ref[...]                                             # (tm, D) f32 residual
    h = jnp.dot(x.astype(jnp.bfloat16), w1_ref[...],
                preferred_element_type=jnp.float32) + b1_ref[...]
    h = jnp.maximum(h, 0.0)                                    # relu is exact per f-chunk
    acc_ref[...] += jnp.dot(h.astype(jnp.bfloat16), w2_ref[...],
                            preferred_element_type=jnp.float32)

    @pl.when(f == pl.num_programs(1) - 1)
    def _():
        z = acc_ref[...] + b2_ref[...] + x.astype(jnp.float32)
        o_ref[...] = _layernorm(z, g_ref[...], be_ref[...], eps).astype(o_ref.dtype)


def _self_attn_kernel(qkv_ref, m_ref, o_ref, *, num_heads, d_model):
    """qkv_ref: [1, S, 3D] fused Q|K|V (bf16, lane-dense); mask: [1, Sq, Sk] (bf16)."""
    dh = d_model // num_heads
    qkv = qkv_ref[0]                     # [S, 3D]
    mask = m_ref[0]                      # [Sq, Sk]
    for h in range(num_heads):
        q = qkv[:, h * dh:(h + 1) * dh]
        k = qkv[:, d_model + h * dh:d_model + (h + 1) * dh]
        v = qkv[:, 2 * d_model + h * dh:2 * d_model + (h + 1) * dh]
        # direct per-head store: only one head's result live at a time
        o_ref[0, :, h * dh:(h + 1) * dh] = _attend_head(q, k, v, mask).astype(o_ref.dtype)
    # TODO(synk): flash-style Sq/Sk tiling with an online-softmax accumulator for
    # long sequences (the full [Sq, Sk] score block only fits VMEM at moderate S).


def _cross_attn_kernel(q_ref, kv_ref, m_ref, o_ref, *, num_heads, d_model):
    """q_ref: [1, Sq, D]; kv_ref: [1, Sk, 2D] fused K|V; mask: [1, Sq, Sk]; all bf16."""
    dh = d_model // num_heads
    qm = q_ref[0]                        # [Sq, D]
    kv = kv_ref[0]                       # [Sk, 2D]
    mask = m_ref[0]
    for h in range(num_heads):
        q = qm[:, h * dh:(h + 1) * dh]
        k = kv[:, h * dh:(h + 1) * dh]
        v = kv[:, d_model + h * dh:d_model + (h + 1) * dh]
        o_ref[0, :, h * dh:(h + 1) * dh] = _attend_head(q, k, v, mask).astype(o_ref.dtype)


# ----------------------------- wrappers -------------------------------------

def linear(x2d, w, b, out_dtype=None):
    """Tiled, pipelined X @ W + b with bf16 weights, f32 accumulation."""
    M, K = x2d.shape
    N = w.shape[1]
    out_dtype = out_dtype or x2d.dtype
    tm = _pick_tile(M, 512, 16)
    tn = _pick_tile(N, 512, 128)
    tk = _pick_tile(K, 512, 128)
    wb = w.astype(jnp.bfloat16)                       # cast once at wrapper level
    est = (2 * (tm * tk * x2d.dtype.itemsize + tk * tn * 2 + tn * 4)
           + 2 * tm * tn * jnp.dtype(out_dtype).itemsize + tm * tn * 4)
    return pl.pallas_call(
        _matmul_bias_kernel,
        out_shape=jax.ShapeDtypeStruct((M, N), out_dtype),
        grid=(M // tm, N // tn, K // tk),
        in_specs=[pl.BlockSpec((tm, tk), lambda i, j, k: (i, k)),
                  pl.BlockSpec((tk, tn), lambda i, j, k: (k, j)),
                  pl.BlockSpec((1, tn), lambda i, j, k: (0, j))],
        out_specs=pl.BlockSpec((tm, tn), lambda i, j, k: (i, j)),
        scratch_shapes=[pltpu.VMEM((tm, tn), jnp.float32)],
        compiler_params=_compiler_params(("parallel", "parallel", "arbitrary"), est),
    )(x2d, wb, b.reshape(1, N).astype(jnp.float32))


def proj_residual_ln(h2d, w, b, res2d, gamma, beta, eps=1e-5):
    """LayerNorm(res + h @ W + b); residual + LN fused into the projection. f32 output."""
    M, K = h2d.shape
    D = w.shape[1]
    tm = _pick_tile(M, 512, 16)
    tk = _pick_tile(K, 512, 128)
    wb = w.astype(jnp.bfloat16)
    est = (2 * (tm * tk * h2d.dtype.itemsize + tk * D * 2 + tm * D * 4)
           + 3 * D * 4 + tm * D * 4 + 2 * tm * D * 4)
    return pl.pallas_call(
        functools.partial(_proj_residual_ln_kernel, eps=eps),
        out_shape=jax.ShapeDtypeStruct((M, D), jnp.float32),
        grid=(M // tm, K // tk),
        in_specs=[pl.BlockSpec((tm, tk), lambda i, k: (i, k)),
                  pl.BlockSpec((tk, D), lambda i, k: (k, 0)),
                  pl.BlockSpec((1, D), lambda i, k: (0, 0)),
                  pl.BlockSpec((tm, D), lambda i, k: (i, 0)),
                  pl.BlockSpec((1, D), lambda i, k: (0, 0)),
                  pl.BlockSpec((1, D), lambda i, k: (0, 0))],
        out_specs=pl.BlockSpec((tm, D), lambda i, k: (i, 0)),
        scratch_shapes=[pltpu.VMEM((tm, D), jnp.float32)],
        compiler_params=_compiler_params(("parallel", "arbitrary"), est),
    )(h2d, wb, b.reshape(1, D), res2d, gamma.reshape(1, D), beta.reshape(1, D))


def ffn_residual_ln(x2d, w1, b1, w2, b2, gamma, beta, eps=1e-5):
    """LayerNorm(x + relu(x@W1+b1)@W2 + b2); d_ff contraction tiled over a grid axis."""
    M, D = x2d.shape
    F = w1.shape[1]
    tm = _pick_tile(M, 512, 16)
    tf = _pick_tile(F, 512, 128)
    w1b = w1.astype(jnp.bfloat16)
    w2b = w2.astype(jnp.bfloat16)
    est = (2 * (tm * D * x2d.dtype.itemsize + D * tf * 2 + tf * 4 + tf * D * 2)
           + 3 * D * 4 + tm * tf * 4 + tm * D * 4 + 2 * tm * D * 4)
    return pl.pallas_call(
        functools.partial(_ffn_residual_ln_kernel, eps=eps),
        out_shape=jax.ShapeDtypeStruct((M, D), jnp.float32),
        grid=(M // tm, F // tf),
        in_specs=[pl.BlockSpec((tm, D), lambda i, f: (i, 0)),
                  pl.BlockSpec((D, tf), lambda i, f: (0, f)),
                  pl.BlockSpec((1, tf), lambda i, f: (0, f)),
                  pl.BlockSpec((tf, D), lambda i, f: (f, 0)),
                  pl.BlockSpec((1, D), lambda i, f: (0, 0)),
                  pl.BlockSpec((1, D), lambda i, f: (0, 0)),
                  pl.BlockSpec((1, D), lambda i, f: (0, 0))],
        out_specs=pl.BlockSpec((tm, D), lambda i, f: (i, 0)),
        scratch_shapes=[pltpu.VMEM((tm, D), jnp.float32)],
        compiler_params=_compiler_params(("parallel", "arbitrary"), est),
    )(x2d, w1b, b1.reshape(1, F), w2b, b2.reshape(1, D),
      gamma.reshape(1, D), beta.reshape(1, D))


def self_attention(qkv, mask, num_heads):
    B, S, three_d = qkv.shape
    D = three_d // 3
    est = 2 * (S * three_d * 2 + S * S * 2 + S * D * 2) + 2 * S * S * 4
    return pl.pallas_call(
        functools.partial(_self_attn_kernel, num_heads=num_heads, d_model=D),
        out_shape=jax.ShapeDtypeStruct((B, S, D), jnp.bfloat16),
        grid=(B,),
        in_specs=[pl.BlockSpec((1, S, three_d), lambda b: (b, 0, 0)),
                  pl.BlockSpec((1, S, S), lambda b: (b, 0, 0))],
        out_specs=pl.BlockSpec((1, S, D), lambda b: (b, 0, 0)),
        compiler_params=_compiler_params(("parallel",), est),
    )(qkv, mask)


def cross_attention(q, kv, mask, num_heads):
    B, Sq, D = q.shape
    Sk = kv.shape[1]
    est = 2 * (Sq * D * 2 + Sk * 2 * D * 2 + Sq * Sk * 2 + Sq * D * 2) + 2 * Sq * Sk * 4
    return pl.pallas_call(
        functools.partial(_cross_attn_kernel, num_heads=num_heads, d_model=D),
        out_shape=jax.ShapeDtypeStruct((B, Sq, D), jnp.bfloat16),
        grid=(B,),
        in_specs=[pl.BlockSpec((1, Sq, D), lambda b: (b, 0, 0)),
                  pl.BlockSpec((1, Sk, 2 * D), lambda b: (b, 0, 0)),
                  pl.BlockSpec((1, Sq, Sk), lambda b: (b, 0, 0))],
        out_specs=pl.BlockSpec((1, Sq, D), lambda b: (b, 0, 0)),
        compiler_params=_compiler_params(("parallel",), est),
    )(q, kv, mask)


# ----------------------------- decoder block --------------------------------

@functools.partial(jax.jit, static_argnames=("num_heads",))
def decoder_block_forward(params, x_cross, x_self, cross_mask, self_mask, *, num_heads):
    B, S, D = x_self.shape
    Sk = x_cross.shape[1]
    M = B * S
    scale = 1.0 / math.sqrt(D // num_heads)

    g, b = params["ln_g"], params["ln_b"]           # one shared LayerNorm, as in the module
    sa, ca, ffn = params["self_attn"], params["cross_attn"], params["ffn"]

    x_self2d = x_self.reshape(M, D)
    x_cross2d = x_cross.reshape(B * Sk, D)

    # fold the 1/sqrt(dh) softmax scale into the Q projections (trace-time, tiny op)
    qkv_colscale = jnp.concatenate(
        [jnp.full((D,), scale, jnp.float32), jnp.ones((2 * D,), jnp.float32)])
    w_qkv = sa["w_qkv"] * qkv_colscale
    b_qkv = sa["b_qkv"] * qkv_colscale
    wq = ca["wq"] * scale
    bq = ca["bq"] * scale

    # masks travel as bf16 (values are exactly 0/1)
    self_m = self_mask.reshape(B, S, S).astype(jnp.bfloat16)
    cross_m = cross_mask.reshape(B, S, Sk).astype(jnp.bfloat16)

    # ---- self attention ----
    qkv = linear(x_self2d, w_qkv, b_qkv, out_dtype=jnp.bfloat16).reshape(B, S, 3 * D)
    attn = self_attention(qkv, self_m, num_heads)                       # [B,S,D] bf16
    x1 = proj_residual_ln(attn.reshape(M, D), sa["wo"], sa["bo"], x_self2d, g, b)

    # ---- cross attention ----
    q = linear(x1, wq, bq, out_dtype=jnp.bfloat16).reshape(B, S, D)
    kv = linear(x_cross2d, ca["w_kv"], ca["b_kv"],
                out_dtype=jnp.bfloat16).reshape(B, Sk, 2 * D)
    attn2 = cross_attention(q, kv, cross_m, num_heads)                  # [B,S,D] bf16
    x2 = proj_residual_ln(attn2.reshape(M, D), ca["wo"], ca["bo"], x1, g, b)

    # ---- feed-forward ----
    x3 = ffn_residual_ln(x2, ffn["w1"], ffn["b1"], ffn["w2"], ffn["b2"], g, b)
    return x3.reshape(B, S, D)


# ----------------------------- parameter init -------------------------------

def init_params(key, d_model, d_ff):
    ks = jax.random.split(key, 16)
    s = 1.0 / math.sqrt(d_model)
    sf = 1.0 / math.sqrt(d_ff)

    def U(k, shape, bound):
        return jax.random.uniform(k, shape, jnp.float32, -bound, bound)

    self_attn = dict(
        w_qkv=U(ks[0], (d_model, 3 * d_model), s), b_qkv=U(ks[1], (3 * d_model,), s),
        wo=U(ks[2], (d_model, d_model), s), bo=U(ks[3], (d_model,), s))
    cross_attn = dict(
        wq=U(ks[4], (d_model, d_model), s), bq=U(ks[5], (d_model,), s),
        w_kv=U(ks[6], (d_model, 2 * d_model), s), b_kv=U(ks[7], (2 * d_model,), s),
        wo=U(ks[8], (d_model, d_model), s), bo=U(ks[9], (d_model,), s))
    ffn = dict(w1=U(ks[10], (d_model, d_ff), s), b1=U(ks[11], (d_ff,), s),
               w2=U(ks[12], (d_ff, d_model), sf), b2=U(ks[13], (d_model,), sf))
    return dict(
        ln_g=jnp.ones((d_model,), jnp.float32),
        ln_b=jnp.zeros((d_model,), jnp.float32),
        self_attn=self_attn, cross_attn=cross_attn, ffn=ffn)


# ----------------------------- main ------------------------------------------

if __name__ == "__main__":
    B, S, d_model, d_ff, num_heads = 2, 8, 32, 64, 4

    key = jax.random.PRNGKey(0)
    k_p, k_self, k_cross = jax.random.split(key, 3)

    params = init_params(k_p, d_model, d_ff)
    x_self = jax.random.normal(k_self, (B, S, d_model), jnp.float32)
    x_cross = jax.random.normal(k_cross, (B, S, d_model), jnp.float32)

    # causal self mask, full cross mask (1 = keep, 0 = masked)
    self_mask = jnp.broadcast_to(jnp.tril(jnp.ones((S, S), jnp.float32)), (B, 1, S, S))
    cross_mask = jnp.ones((B, 1, S, S), jnp.float32)

    out = decoder_block_forward(params, x_cross, x_self, cross_mask, self_mask,
                                num_heads=num_heads)
    jax.block_until_ready(out)
    assert out.shape == (B, S, d_model)
    assert bool(jnp.all(jnp.isfinite(out)))
    print("KERNEL_OK")
</pallas_src>

<mosaic_0001>
module attributes {stable_mosaic.version = 11 : i64} {
  func.func @_matmul_bias_kernel(%arg0: i32, %arg1: i32, %arg2: i32, %arg3: memref<16x32xf32, #tpu.memory_space<vmem>>, %arg4: memref<32x96xbf16, #tpu.memory_space<vmem>>, %arg5: memref<1x96xf32, #tpu.memory_space<vmem>>, %arg6: memref<16x96xbf16, #tpu.memory_space<vmem>>, %arg7: memref<16x96xf32, #tpu.memory_space<vmem>>) attributes {dimension_semantics = [#tpu.dimension_semantics<parallel>, #tpu.dimension_semantics<parallel>, #tpu.dimension_semantics<arbitrary>], iteration_bounds = array<i64: 1, 1, 1>, scalar_prefetch = 0 : i64, scratch_operands = 1 : i64, tpu.core_type = #tpu.core_type<tc>, window_params = [{transform_indices = @transform_0, window_bounds = array<i64: 16, 32>}, {transform_indices = @transform_1, window_bounds = array<i64: 32, 96>}, {transform_indices = @transform_2, window_bounds = array<i64: 1, 96>}, {transform_indices = @transform_3, window_bounds = array<i64: 16, 96>}]} {
    %c0_i32 = arith.constant 0 : i32
    %0 = arith.cmpi eq, %arg2, %c0_i32 : i32
    %1 = arith.extui %0 : i1 to i32
    %c0_i32_0 = arith.constant 0 : i32
    %2 = arith.cmpi ne, %1, %c0_i32_0 : i32
    scf.if %2 {
      %cst_10 = arith.constant 0.000000e+00 : f32
      %13 = vector.broadcast %cst_10 : f32 to vector<16x96xf32>
      %c0_11 = arith.constant 0 : index
      %c0_12 = arith.constant 0 : index
      %14 = vector.load %arg7[%c0_11, %c0_12] : memref<16x96xf32, #tpu.memory_space<vmem>>, vector<16x96xf32>
      tpu.vector_store %arg7[%c0_11, %c0_12], %13 {strides = array<i32>} : memref<16x96xf32, #tpu.memory_space<vmem>>, vector<16x96xf32>,
    } else {
    }
    %c0 = arith.constant 0 : index
    %c0_1 = arith.constant 0 : index
    %3 = vector.load %arg7[%c0, %c0_1] : memref<16x96xf32, #tpu.memory_space<vmem>>, vector<16x96xf32>
    %c0_2 = arith.constant 0 : index
    %c0_3 = arith.constant 0 : index
    %4 = vector.load %arg3[%c0_2, %c0_3] : memref<16x32xf32, #tpu.memory_space<vmem>>, vector<16x32xf32>
    %5 = arith.truncf %4 : vector<16x32xf32> to vector<16x32xbf16>
    %c0_4 = arith.constant 0 : index
    %c0_5 = arith.constant 0 : index
    %6 = vector.load %arg4[%c0_4, %c0_5] : memref<32x96xbf16, #tpu.memory_space<vmem>>, vector<32x96xbf16>
    %cst = arith.constant dense<0.000000e+00> : vector<16x96xf32>
    %7 = tpu.matmul %5, %6, %cst {dimension_numbers = #tpu.dot_dimension_numbers<[1], [0], [0], [1], [0, 0, 1, 1], [], []>} : vector<16x32xbf16>, vector<32x96xbf16>, vector<16x96xf32> -> vector<16x96xf32>
    %8 = arith.addf %3, %7 : vector<16x96xf32>
    %c0_6 = arith.constant 0 : index
    %c0_7 = arith.constant 0 : index
    %9 = vector.load %arg7[%c0_6, %c0_7] : memref<16x96xf32, #tpu.memory_space<vmem>>, vector<16x96xf32>
    tpu.vector_store %arg7[%c0_6, %c0_7], %8 {strides = array<i32>} : memref<16x96xf32, #tpu.memory_space<vmem>>, vector<16x96xf32>,
    %c0_i32_8 = arith.constant 0 : i32
    %10 = arith.cmpi eq, %arg2, %c0_i32_8 : i32
    %11 = arith.extui %10 : i1 to i32
    %c0_i32_9 = arith.constant 0 : i32
    %12 = arith.cmpi ne, %11, %c0_i32_9 : i32
    scf.if %12 {
      %c0_10 = arith.constant 0 : index
      %c0_11 = arith.constant 0 : index
      %13 = vector.load %arg7[%c0_10, %c0_11] : memref<16x96xf32, #tpu.memory_space<vmem>>, vector<16x96xf32>
      %c0_12 = arith.constant 0 : index
      %c0_13 = arith.constant 0 : index
      %14 = vector.load %arg5[%c0_12, %c0_13] : memref<1x96xf32, #tpu.memory_space<vmem>>, vector<1x96xf32>
      %15 = vector.broadcast %14 : vector<1x96xf32> to vector<16x96xf32>
      %16 = arith.addf %13, %15 : vector<16x96xf32>
      %17 = arith.truncf %16 : vector<16x96xf32> to vector<16x96xbf16>
      %c0_14 = arith.constant 0 : index
      %c0_15 = arith.constant 0 : index
      %18 = vector.load %arg6[%c0_14, %c0_15] : memref<16x96xbf16, #tpu.memory_space<vmem>>, vector<16x96xbf16>
      tpu.vector_store %arg6[%c0_14, %c0_15], %17 {strides = array<i32>} : memref<16x96xbf16, #tpu.memory_space<vmem>>, vector<16x96xbf16>,
    } else {
    }
    return
  }
  func.func @transform_0(%arg0: i32, %arg1: i32, %arg2: i32) -> (i32, i32) {
    %c0_i32 = arith.constant 0 : i32
    return %arg0, %arg2 : i32, i32
  }
  func.func @transform_1(%arg0: i32, %arg1: i32, %arg2: i32) -> (i32, i32) {
    %c0_i32 = arith.constant 0 : i32
    return %arg2, %arg1 : i32, i32
  }
  func.func @transform_2(%arg0: i32, %arg1: i32, %arg2: i32) -> (i32, i32) {
    %c0_i32 = arith.constant 0 : i32
    %c0_i32_0 = arith.constant 0 : i32
    return %c0_i32, %arg1 : i32, i32
  }
  func.func @transform_3(%arg0: i32, %arg1: i32, %arg2: i32) -> (i32, i32) {
    %c0_i32 = arith.constant 0 : i32
    return %arg0, %arg1 : i32, i32
  }
}

module attributes {stable_mosaic.version = 11 : i64} {
  func.func @_proj_residual_ln_kernel(%arg0: i32, %arg1: i32, %arg2: memref<16x32xbf16, #tpu.memory_space<vmem>>, %arg3: memref<32x32xbf16, #tpu.memory_space<vmem>>, %arg4: memref<1x32xf32, #tpu.memory_space<vmem>>, %arg5: memref<16x32xf32, #tpu.memory_space<vmem>>, %arg6: memref<1x32xf32, #tpu.memory_space<vmem>>, %arg7: memref<1x32xf32, #tpu.memory_space<vmem>>, %arg8: memref<16x32xf32, #tpu.memory_space<vmem>>, %arg9: memref<16x32xf32, #tpu.memory_space<vmem>>) attributes {dimension_semantics = [#tpu.dimension_semantics<parallel>, #tpu.dimension_semantics<arbitrary>], iteration_bounds = array<i64: 1, 1>, scalar_prefetch = 0 : i64, scratch_operands = 1 : i64, tpu.core_type = #tpu.core_type<tc>, window_params = [{transform_indices = @transform_0, window_bounds = array<i64: 16, 32>}, {transform_indices = @transform_1, window_bounds = array<i64: 32, 32>}, {pipeline_mode = #tpu.pipeline_mode<synchronous>, transform_indices = @transform_2, window_bounds = array<i64: 1, 32>}, {transform_indices = @transform_3, window_bounds = array<i64: 16, 32>}, {pipeline_mode = #tpu.pipeline_mode<synchronous>, transform_indices = @transform_4, window_bounds = array<i64: 1, 32>}, {pipeline_mode = #tpu.pipeline_mode<synchronous>, transform_indices = @transform_5, window_bounds = array<i64: 1, 32>}, {transform_indices = @transform_6, window_bounds = array<i64: 16, 32>}]} {
    %c0_i32 = arith.constant 0 : i32
    %0 = arith.cmpi eq, %arg1, %c0_i32 : i32
    %1 = arith.extui %0 : i1 to i32
    %c0_i32_0 = arith.constant 0 : i32
    %2 = arith.cmpi ne, %1, %c0_i32_0 : i32
    scf.if %2 {
      %cst_10 = arith.constant 0.000000e+00 : f32
      %12 = vector.broadcast %cst_10 : f32 to vector<16x32xf32>
      %c0_11 = arith.constant 0 : index
      %c0_12 = arith.constant 0 : index
      %13 = vector.load %arg9[%c0_11, %c0_12] : memref<16x32xf32, #tpu.memory_space<vmem>>, vector<16x32xf32>
      tpu.vector_store %arg9[%c0_11, %c0_12], %12 {strides = array<i32>} : memref<16x32xf32, #tpu.memory_space<vmem>>, vector<16x32xf32>,
    } else {
    }
    %c0 = arith.constant 0 : index
    %c0_1 = arith.constant 0 : index
    %3 = vector.load %arg9[%c0, %c0_1] : memref<16x32xf32, #tpu.memory_space<vmem>>, vector<16x32xf32>
    %c0_2 = arith.constant 0 : index
    %c0_3 = arith.constant 0 : index
    %4 = vector.load %arg2[%c0_2, %c0_3] : memref<16x32xbf16, #tpu.memory_space<vmem>>, vector<16x32xbf16>
    %c0_4 = arith.constant 0 : index
    %c0_5 = arith.constant 0 : index
    %5 = vector.load %arg3[%c0_4, %c0_5] : memref<32x32xbf16, #tpu.memory_space<vmem>>, vector<32x32xbf16>
    %cst = arith.constant dense<0.000000e+00> : vector<16x32xf32>
    %6 = tpu.matmul %4, %5, %cst {dimension_numbers = #tpu.dot_dimension_numbers<[1], [0], [0], [1], [0, 0, 1, 1], [], []>} : vector<16x32xbf16>, vector<32x32xbf16>, vector<16x32xf32> -> vector<16x32xf32>
    %7 = arith.addf %3, %6 : vector<16x32xf32>
    %c0_6 = arith.constant 0 : index
    %c0_7 = arith.constant 0 : index
    %8 = vector.load %arg9[%c0_6, %c0_7] : memref<16x32xf32, #tpu.memory_space<vmem>>, vector<16x32xf32>
    tpu.vector_store %arg9[%c0_6, %c0_7], %7 {strides = array<i32>} : memref<16x32xf32, #tpu.memory_space<vmem>>, vector<16x32xf32>,
    %c0_i32_8 = arith.constant 0 : i32
    %9 = arith.cmpi eq, %arg1, %c0_i32_8 : i32
    %10 = arith.extui %9 : i1 to i32
    %c0_i32_9 = arith.constant 0 : i32
    %11 = arith.cmpi ne, %10, %c0_i32_9 : i32
    scf.if %11 {
      %c0_10 = arith.constant 0 : index
      %c0_11 = arith.constant 0 : index
      %12 = vector.load %arg9[%c0_10, %c0_11] : memref<16x32xf32, #tpu.memory_space<vmem>>, vector<16x32xf32>
      %c0_12 = arith.constant 0 : index
      %c0_13 = arith.constant 0 : index
      %13 = vector.load %arg4[%c0_12, %c0_13] : memref<1x32xf32, #tpu.memory_space<vmem>>, vector<1x32xf32>
      %14 = vector.broadcast %13 : vector<1x32xf32> to vector<16x32xf32>
      %15 = arith.addf %12, %14 : vector<16x32xf32>
      %c0_14 = arith.constant 0 : index
      %c0_15 = arith.constant 0 : index
      %16 = vector.load %arg5[%c0_14, %c0_15] : memref<16x32xf32, #tpu.memory_space<vmem>>, vector<16x32xf32>
      %17 = arith.addf %15, %16 : vector<16x32xf32>
      %c0_16 = arith.constant 0 : index
      %c0_17 = arith.constant 0 : index
      %18 = vector.load %arg6[%c0_16, %c0_17] : memref<1x32xf32, #tpu.memory_space<vmem>>, vector<1x32xf32>
      %c0_18 = arith.constant 0 : index
      %c0_19 = arith.constant 0 : index
      %19 = vector.load %arg7[%c0_18, %c0_19] : memref<1x32xf32, #tpu.memory_space<vmem>>, vector<1x32xf32>
      %cst_20 = arith.constant dense<0.000000e+00> : vector<16xf32>
      %20 = vector.multi_reduction <add>, %17, %cst_20 [1] : vector<16x32xf32> to vector<16xf32>
      %21 = vector.shape_cast %20 : vector<16xf32> to vector<16x1xf32>
      %cst_21 = arith.constant 3.200000e+01 : f32
      %22 = vector.broadcast %cst_21 : f32 to vector<16x1xf32>
      %23 = arith.divf %21, %22 : vector<16x1xf32>
      %24 = vector.broadcast %23 : vector<16x1xf32> to vector<16x32xf32>
      %25 = arith.subf %17, %24 : vector<16x32xf32>
      %26 = arith.mulf %25, %25 : vector<16x32xf32>
      %cst_22 = arith.constant dense<0.000000e+00> : vector<16xf32>
      %27 = vector.multi_reduction <add>, %26, %cst_22 [1] : vector<16x32xf32> to vector<16xf32>
      %28 = vector.shape_cast %27 : vector<16xf32> to vector<16x1xf32>
      %cst_23 = arith.constant 3.200000e+01 : f32
      %29 = vector.broadcast %cst_23 : f32 to vector<16x1xf32>
      %30 = arith.divf %28, %29 : vector<16x1xf32>
      %31 = vector.broadcast %23 : vector<16x1xf32> to vector<16x32xf32>
      %32 = arith.subf %17, %31 : vector<16x32xf32>
      %cst_24 = arith.constant 9.99999974E-6 : f32
      %33 = vector.broadcast %cst_24 : f32 to vector<16x1xf32>
      %34 = arith.addf %30, %33 : vector<16x1xf32>
      %35 = math.rsqrt %34 : vector<16x1xf32>
      %36 = vector.broadcast %35 : vector<16x1xf32> to vector<16x32xf32>
      %37 = arith.mulf %32, %36 : vector<16x32xf32>
      %38 = vector.broadcast %18 : vector<1x32xf32> to vector<16x32xf32>
      %39 = arith.mulf %37, %38 : vector<16x32xf32>
      %40 = vector.broadcast %19 : vector<1x32xf32> to vector<16x32xf32>
      %41 = arith.addf %39, %40 : vector<16x32xf32>
      %c0_25 = arith.constant 0 : index
      %c0_26 = arith.constant 0 : index
      %42 = vector.load %arg8[%c0_25, %c0_26] : memref<16x32xf32, #tpu.memory_space<vmem>>, vector<16x32xf32>
      tpu.vector_store %arg8[%c0_25, %c0_26], %41 {strides = array<i32>} : memref<16x32xf32, #tpu.memory_space<vmem>>, vector<16x32xf32>,
    } else {
    }
    return
  }
  func.func @transform_0(%arg0: i32, %arg1: i32) -> (i32, i32) {
    %c0_i32 = arith.constant 0 : i32
    return %arg0, %arg1 : i32, i32
  }
  func.func @transform_1(%arg0: i32, %arg1: i32) -> (i32, i32) {
    %c0_i32 = arith.constant 0 : i32
    %c0_i32_0 = arith.constant 0 : i32
    return %arg1, %c0_i32 : i32, i32
  }
  func.func @transform_2(%arg0: i32, %arg1: i32) -> (i32, i32) {
    %c0_i32 = arith.constant 0 : i32
    %c0_i32_0 = arith.constant 0 : i32
    %c0_i32_1 = arith.constant 0 : i32
    return %c0_i32, %c0_i32_0 : i32, i32
  }
  func.func @transform_3(%arg0: i32, %arg1: i32) -> (i32, i32) {
    %c0_i32 = arith.constant 0 : i32
    %c0_i32_0 = arith.constant 0 : i32
    return %arg0, %c0_i32 : i32, i32
  }
  func.func @transform_4(%arg0: i32, %arg1: i32) -> (i32, i32) {
    %c0_i32 = arith.constant 0 : i32
    %c0_i32_0 = arith.constant 0 : i32
    %c0_i32_1 = arith.constant 0 : i32
    return %c0_i32, %c0_i32_0 : i32, i32
  }
  func.func @transform_5(%arg0: i32, %arg1: i32) -> (i32, i32) {
    %c0_i32 = arith.constant 0 : i32
    %c0_i32_0 = arith.constant 0 : i32
    %c0_i32_1 = arith.constant 0 : i32
    return %c0_i32, %c0_i32_0 : i32, i32
  }
  func.func @transform_6(%arg0: i32, %arg1: i32) -> (i32, i32) {
    %c0_i32 = arith.constant 0 : i32
    %c0_i32_0 = arith.constant 0 : i32
    return %arg0, %c0_i32 : i32, i32
  }
}

module attributes {stable_mosaic.version = 11 : i64} {
  func.func @_self_attn_kernel(%arg0: i32, %arg1: memref<1x8x96xbf16, #tpu.memory_space<vmem>>, %arg2: memref<1x8x8xbf16, #tpu.memory_space<vmem>>, %arg3: memref<1x8x32xbf16, #tpu.memory_space<vmem>>) attributes {dimension_semantics = [#tpu.dimension_semantics<parallel>], iteration_bounds = array<i64: 2>, scalar_prefetch = 0 : i64, scratch_operands = 0 : i64, tpu.core_type = #tpu.core_type<tc>, window_params = [{transform_indices = @transform_0, window_bounds = array<i64: 1, 8, 96>}, {transform_indices = @transform_1, window_bounds = array<i64: 1, 8, 8>}, {transform_indices = @transform_2, window_bounds = array<i64: 1, 8, 32>}]} {
    %c0 = arith.constant 0 : index
    %c0_0 = arith.constant 0 : index
    %c0_1 = arith.constant 0 : index
    %0 = vector.load %arg1[%c0, %c0_0, %c0_1] : memref<1x8x96xbf16, #tpu.memory_space<vmem>>, vector<1x8x96xbf16>
    %1 = vector.shape_cast %0 : vector<1x8x96xbf16> to vector<8x96xbf16>
    %c0_2 = arith.constant 0 : index
    %c0_3 = arith.constant 0 : index
    %c0_4 = arith.constant 0 : index
    %2 = vector.load %arg2[%c0_2, %c0_3, %c0_4] : memref<1x8x8xbf16, #tpu.memory_space<vmem>>, vector<1x8x8xbf16>
    %3 = vector.shape_cast %2 : vector<1x8x8xbf16> to vector<8x8xbf16>
    %4 = vector.extract_strided_slice %1 {offsets = [0, 0], sizes = [8, 8], strides = [1, 1]} : vector<8x96xbf16> to vector<8x8xbf16>
    %5 = vector.extract_strided_slice %1 {offsets = [0, 32], sizes = [8, 8], strides = [1, 1]} : vector<8x96xbf16> to vector<8x8xbf16>
    %6 = vector.extract_strided_slice %1 {offsets = [0, 64], sizes = [8, 8], strides = [1, 1]} : vector<8x96xbf16> to vector<8x8xbf16>
    %cst = arith.constant dense<0.000000e+00> : vector<8x8xf32>
    %7 = tpu.matmul %4, %5, %cst {dimension_numbers = #tpu.dot_dimension_numbers<[1], [1], [0], [0], [0, 0, 1, 0], [], []>} : vector<8x8xbf16>, vector<8x8xbf16>, vector<8x8xf32> -> vector<8x8xf32>
    %cst_5 = arith.constant 0.000000e+00 : bf16
    %8 = vector.broadcast %cst_5 : bf16 to vector<8x8xbf16>
    %9 = arith.cmpf oeq, %3, %8 : vector<8x8xbf16>
    %cst_6 = arith.constant -1.000000e+09 : f32
    %10 = vector.broadcast %cst_6 : f32 to vector<8x8xf32>
    %11 = arith.select %9, %10, %7 : vector<8x8xi1>, vector<8x8xf32>
    %cst_7 = arith.constant dense<0xFF800000> : vector<8xf32>
    %12 = vector.multi_reduction <maximumf>, %11, %cst_7 [1] : vector<8x8xf32> to vector<8xf32>
    %13 = vector.shape_cast %12 : vector<8xf32> to vector<8x1xf32>
    %14 = vector.broadcast %13 : vector<8x1xf32> to vector<8x8xf32>
    %15 = arith.subf %11, %14 : vector<8x8xf32>
    %16 = math.exp %15 : vector<8x8xf32>
    %cst_8 = arith.constant dense<0.000000e+00> : vector<8xf32>
    %17 = vector.multi_reduction <add>, %16, %cst_8 [1] : vector<8x8xf32> to vector<8xf32>
    %18 = vector.shape_cast %17 : vector<8xf32> to vector<8x1xf32>
    %19 = tpu.reciprocal %18 {approx = true} : vector<8x1xf32> -> vector<8x1xf32>
    %20 = vector.broadcast %19 : vector<8x1xf32> to vector<8x8xf32>
    %21 = arith.mulf %16, %20 : vector<8x8xf32>
    %22 = arith.truncf %21 : vector<8x8xf32> to vector<8x8xbf16>
    %cst_9 = arith.constant dense<0.000000e+00> : vector<8x8xf32>
    %23 = tpu.matmul %22, %6, %cst_9 {dimension_numbers = #tpu.dot_dimension_numbers<[1], [0], [0], [1], [0, 0, 1, 1], [], []>} : vector<8x8xbf16>, vector<8x8xbf16>, vector<8x8xf32> -> vector<8x8xf32>
    %24 = arith.truncf %23 : vector<8x8xf32> to vector<8x8xbf16>
    %c0_10 = arith.constant 0 : index
    %c0_11 = arith.constant 0 : index
    %c0_12 = arith.constant 0 : index
    %25 = vector.load %arg3[%c0_10, %c0_11, %c0_12] : memref<1x8x32xbf16, #tpu.memory_space<vmem>>, vector<1x8x8xbf16>
    %26 = vector.shape_cast %25 : vector<1x8x8xbf16> to vector<8x8xbf16>
    %27 = vector.shape_cast %24 : vector<8x8xbf16> to vector<1x8x8xbf16>
    tpu.vector_store %arg3[%c0_10, %c0_11, %c0_12], %27 {strides = array<i32>} : memref<1x8x32xbf16, #tpu.memory_space<vmem>>, vector<1x8x8xbf16>,
    %28 = vector.extract_strided_slice %1 {offsets = [0, 8], sizes = [8, 8], strides = [1, 1]} : vector<8x96xbf16> to vector<8x8xbf16>
    %29 = vector.extract_strided_slice %1 {offsets = [0, 40], sizes = [8, 8], strides = [1, 1]} : vector<8x96xbf16> to vector<8x8xbf16>
    %30 = vector.extract_strided_slice %1 {offsets = [0, 72], sizes = [8, 8], strides = [1, 1]} : vector<8x96xbf16> to vector<8x8xbf16>
    %cst_13 = arith.constant dense<0.000000e+00> : vector<8x8xf32>
    %31 = tpu.matmul %28, %29, %cst_13 {dimension_numbers = #tpu.dot_dimension_numbers<[1], [1], [0], [0], [0, 0, 1, 0], [], []>} : vector<8x8xbf16>, vector<8x8xbf16>, vector<8x8xf32> -> vector<8x8xf32>
    %cst_14 = arith.constant 0.000000e+00 : bf16
    %32 = vector.broadcast %cst_14 : bf16 to vector<8x8xbf16>
    %33 = arith.cmpf oeq, %3, %32 : vector<8x8xbf16>
    %cst_15 = arith.constant -1.000000e+09 : f32
    %34 = vector.broadcast %cst_15 : f32 to vector<8x8xf32>
    %35 = arith.select %33, %34, %31 : vector<8x8xi1>, vector<8x8xf32>
    %cst_16 = arith.constant dense<0xFF800000> : vector<8xf32>
    %36 = vector.multi_reduction <maximumf>, %35, %cst_16 [1] : vector<8x8xf32> to vector<8xf32>
    %37 = vector.shape_cast %36 : vector<8xf32> to vector<8x1xf32>
    %38 = vector.broadcast %37 : vector<8x1xf32> to vector<8x8xf32>
    %39 = arith.subf %35, %38 : vector<8x8xf32>
    %40 = math.exp %39 : vector<8x8xf32>
    %cst_17 = arith.constant dense<0.000000e+00> : vector<8xf32>
    %41 = vector.multi_reduction <add>, %40, %cst_17 [1] : vector<8x8xf32> to vector<8xf32>
    %42 = vector.shape_cast %41 : vector<8xf32> to vector<8x1xf32>
    %43 = tpu.reciprocal %42 {approx = true} : vector<8x1xf32> -> vector<8x1xf32>
    %44 = vector.broadcast %43 : vector<8x1xf32> to vector<8x8xf32>
    %45 = arith.mulf %40, %44 : vector<8x8xf32>
    %46 = arith.truncf %45 : vector<8x8xf32> to vector<8x8xbf16>
    %cst_18 = arith.constant dense<0.000000e+00> : vector<8x8xf32>
    %47 = tpu.matmul %46, %30, %cst_18 {dimension_numbers = #tpu.dot_dimension_numbers<[1], [0], [0], [1], [0, 0, 1, 1], [], []>} : vector<8x8xbf16>, vector<8x8xbf16>, vector<8x8xf32> -> vector<8x8xf32>
    %48 = arith.truncf %47 : vector<8x8xf32> to vector<8x8xbf16>
    %c0_19 = arith.constant 0 : index
    %c0_20 = arith.constant 0 : index
    %c8 = arith.constant 8 : index
    %49 = vector.load %arg3[%c0_19, %c0_20, %c8] : memref<1x8x32xbf16, #tpu.memory_space<vmem>>, vector<1x8x8xbf16>
    %50 = vector.shape_cast %49 : vector<1x8x8xbf16> to vector<8x8xbf16>
    %51 = vector.shape_cast %48 : vector<8x8xbf16> to vector<1x8x8xbf16>
    tpu.vector_store %arg3[%c0_19, %c0_20, %c8], %51 {strides = array<i32>} : memref<1x8x32xbf16, #tpu.memory_space<vmem>>, vector<1x8x8xbf16>,
    %52 = vector.extract_strided_slice %1 {offsets = [0, 16], sizes = [8, 8], strides = [1, 1]} : vector<8x96xbf16> to vector<8x8xbf16>
    %53 = vector.extract_strided_slice %1 {offsets = [0, 48], sizes = [8, 8], strides = [1, 1]} : vector<8x96xbf16> to vector<8x8xbf16>
    %54 = vector.extract_strided_slice %1 {offsets = [0, 80], sizes = [8, 8], strides = [1, 1]} : vector<8x96xbf16> to vector<8x8xbf16>
    %cst_21 = arith.constant dense<0.000000e+00> : vector<8x8xf32>
    %55 = tpu.matmul %52, %53, %cst_21 {dimension_numbers = #tpu.dot_dimension_numbers<[1], [1], [0], [0], [0, 0, 1, 0], [], []>} : vector<8x8xbf16>, vector<8x8xbf16>, vector<8x8xf32> -> vector<8x8xf32>
    %cst_22 = arith.constant 0.000000e+00 : bf16
    %56 = vector.broadcast %cst_22 : bf16 to vector<8x8xbf16>
    %57 = arith.cmpf oeq, %3, %56 : vector<8x8xbf16>
    %cst_23 = arith.constant -1.000000e+09 : f32
    %58 = vector.broadcast %cst_23 : f32 to vector<8x8xf32>
    %59 = arith.select %57, %58, %55 : vector<8x8xi1>, vector<8x8xf32>
    %cst_24 = arith.constant dense<0xFF800000> : vector<8xf32>
    %60 = vector.multi_reduction <maximumf>, %59, %cst_24 [1] : vector<8x8xf32> to vector<8xf32>
    %61 = vector.shape_cast %60 : vector<8xf32> to vector<8x1xf32>
    %62 = vector.broadcast %61 : vector<8x1xf32> to vector<8x8xf32>
    %63 = arith.subf %59, %62 : vector<8x8xf32>
    %64 = math.exp %63 : vector<8x8xf32>
    %cst_25 = arith.constant dense<0.000000e+00> : vector<8xf32>
    %65 = vector.multi_reduction <add>, %64, %cst_25 [1] : vector<8x8xf32> to vector<8xf32>
    %66 = vector.shape_cast %65 : vector<8xf32> to vector<8x1xf32>
    %67 = tpu.reciprocal %66 {approx = true} : vector<8x1xf32> -> vector<8x1xf32>
    %68 = vector.broadcast %67 : vector<8x1xf32> to vector<8x8xf32>
    %69 = arith.mulf %64, %68 : vector<8x8xf32>
    %70 = arith.truncf %69 : vector<8x8xf32> to vector<8x8xbf16>
    %cst_26 = arith.constant dense<0.000000e+00> : vector<8x8xf32>
    %71 = tpu.matmul %70, %54, %cst_26 {dimension_numbers = #tpu.dot_dimension_numbers<[1], [0], [0], [1], [0, 0, 1, 1], [], []>} : vector<8x8xbf16>, vector<8x8xbf16>, vector<8x8xf32> -> vector<8x8xf32>
    %72 = arith.truncf %71 : vector<8x8xf32> to vector<8x8xbf16>
    %c0_27 = arith.constant 0 : index
    %c0_28 = arith.constant 0 : index
    %c16 = arith.constant 16 : index
    %73 = vector.load %arg3[%c0_27, %c0_28, %c16] : memref<1x8x32xbf16, #tpu.memory_space<vmem>>, vector<1x8x8xbf16>
    %74 = vector.shape_cast %73 : vector<1x8x8xbf16> to vector<8x8xbf16>
    %75 = vector.shape_cast %72 : vector<8x8xbf16> to vector<1x8x8xbf16>
    tpu.vector_store %arg3[%c0_27, %c0_28, %c16], %75 {strides = array<i32>} : memref<1x8x32xbf16, #tpu.memory_space<vmem>>, vector<1x8x8xbf16>,
    %76 = vector.extract_strided_slice %1 {offsets = [0, 24], sizes = [8, 8], strides = [1, 1]} : vector<8x96xbf16> to vector<8x8xbf16>
    %77 = vector.extract_strided_slice %1 {offsets = [0, 56], sizes = [8, 8], strides = [1, 1]} : vector<8x96xbf16> to vector<8x8xbf16>
    %78 = vector.extract_strided_slice %1 {offsets = [0, 88], sizes = [8, 8], strides = [1, 1]} : vector<8x96xbf16> to vector<8x8xbf16>
    %cst_29 = arith.constant dense<0.000000e+00> : vector<8x8xf32>
    %79 = tpu.matmul %76, %77, %cst_29 {dimension_numbers = #tpu.dot_dimension_numbers<[1], [1], [0], [0], [0, 0, 1, 0], [], []>} : vector<8x8xbf16>, vector<8x8xbf16>, vector<8x8xf32> -> vector<8x8xf32>
    %cst_30 = arith.constant 0.000000e+00 : bf16
    %80 = vector.broadcast %cst_30 : bf16 to vector<8x8xbf16>
    %81 = arith.cmpf oeq, %3, %80 : vector<8x8xbf16>
    %cst_31 = arith.constant -1.000000e+09 : f32
    %82 = vector.broadcast %cst_31 : f32 to vector<8x8xf32>
    %83 = arith.select %81, %82, %79 : vector<8x8xi1>, vector<8x8xf32>
    %cst_32 = arith.constant dense<0xFF800000> : vector<8xf32>
    %84 = vector.multi_reduction <maximumf>, %83, %cst_32 [1] : vector<8x8xf32> to vector<8xf32>
    %85 = vector.shape_cast %84 : vector<8xf32> to vector<8x1xf32>
    %86 = vector.broadcast %85 : vector<8x1xf32> to vector<8x8xf32>
    %87 = arith.subf %83, %86 : vector<8x8xf32>
    %88 = math.exp %87 : vector<8x8xf32>
    %cst_33 = arith.constant dense<0.000000e+00> : vector<8xf32>
    %89 = vector.multi_reduction <add>, %88, %cst_33 [1] : vector<8x8xf32> to vector<8xf32>
    %90 = vector.shape_cast %89 : vector<8xf32> to vector<8x1xf32>
    %91 = tpu.reciprocal %90 {approx = true} : vector<8x1xf32> -> vector<8x1xf32>
    %92 = vector.broadcast %91 : vector<8x1xf32> to vector<8x8xf32>
    %93 = arith.mulf %88, %92 : vector<8x8xf32>
    %94 = arith.truncf %93 : vector<8x8xf32> to vector<8x8xbf16>
    %cst_34 = arith.constant dense<0.000000e+00> : vector<8x8xf32>
    %95 = tpu.matmul %94, %78, %cst_34 {dimension_numbers = #tpu.dot_dimension_numbers<[1], [0], [0], [1], [0, 0, 1, 1], [], []>} : vector<8x8xbf16>, vector<8x8xbf16>, vector<8x8xf32> -> vector<8x8xf32>
    %96 = arith.truncf %95 : vector<8x8xf32> to vector<8x8xbf16>
    %c0_35 = arith.constant 0 : index
    %c0_36 = arith.constant 0 : index
    %c24 = arith.constant 24 : index
    %97 = vector.load %arg3[%c0_35, %c0_36, %c24] : memref<1x8x32xbf16, #tpu.memory_space<vmem>>, vector<1x8x8xbf16>
    %98 = vector.shape_cast %97 : vector<1x8x8xbf16> to vector<8x8xbf16>
    %99 = vector.shape_cast %96 : vector<8x8xbf16> to vector<1x8x8xbf16>
    tpu.vector_store %arg3[%c0_35, %c0_36, %c24], %99 {strides = array<i32>} : memref<1x8x32xbf16, #tpu.memory_space<vmem>>, vector<1x8x8xbf16>,
    return
  }
  func.func @transform_0(%arg0: i32) -> (i32, i32, i32) {
    %c0_i32 = arith.constant 0 : i32
    %c0_i32_0 = arith.constant 0 : i32
    %c0_i32_1 = arith.constant 0 : i32
    return %arg0, %c0_i32, %c0_i32_0 : i32, i32, i32
  }
  func.func @transform_1(%arg0: i32) -> (i32, i32, i32) {
    %c0_i32 = arith.constant 0 : i32
    %c0_i32_0 = arith.constant 0 : i32
    %c0_i32_1 = arith.constant 0 : i32
    return %arg0, %c0_i32, %c0_i32_0 : i32, i32, i32
  }
  func.func @transform_2(%arg0: i32) -> (i32, i32, i32) {
    %c0_i32 = arith.constant 0 : i32
    %c0_i32_0 = arith.constant 0 : i32
    %c0_i32_1 = arith.constant 0 : i32
    return %arg0, %c0_i32, %c0_i32_0 : i32, i32, i32
  }
}

module attributes {stable_mosaic.version = 11 : i64} {
  func.func @_matmul_bias_kernel(%arg0: i32, %arg1: i32, %arg2: i32, %arg3: memref<16x32xf32, #tpu.memory_space<vmem>>, %arg4: memref<32x32xbf16, #tpu.memory_space<vmem>>, %arg5: memref<1x32xf32, #tpu.memory_space<vmem>>, %arg6: memref<16x32xbf16, #tpu.memory_space<vmem>>, %arg7: memref<16x32xf32, #tpu.memory_space<vmem>>) attributes {dimension_semantics = [#tpu.dimension_semantics<parallel>, #tpu.dimension_semantics<parallel>, #tpu.dimension_semantics<arbitrary>], iteration_bounds = array<i64: 1, 1, 1>, scalar_prefetch = 0 : i64, scratch_operands = 1 : i64, tpu.core_type = #tpu.core_type<tc>, window_params = [{transform_indices = @transform_0, window_bounds = array<i64: 16, 32>}, {transform_indices = @transform_1, window_bounds = array<i64: 32, 32>}, {transform_indices = @transform_2, window_bounds = array<i64: 1, 32>}, {transform_indices = @transform_3, window_bounds = array<i64: 16, 32>}]} {
    %c0_i32 = arith.constant 0 : i32
    %0 = arith.cmpi eq, %arg2, %c0_i32 : i32
    %1 = arith.extui %0 : i1 to i32
    %c0_i32_0 = arith.constant 0 : i32
    %2 = arith.cmpi ne, %1, %c0_i32_0 : i32
    scf.if %2 {
      %cst_10 = arith.constant 0.000000e+00 : f32
      %13 = vector.broadcast %cst_10 : f32 to vector<16x32xf32>
      %c0_11 = arith.constant 0 : index
      %c0_12 = arith.constant 0 : index
      %14 = vector.load %arg7[%c0_11, %c0_12] : memref<16x32xf32, #tpu.memory_space<vmem>>, vector<16x32xf32>
      tpu.vector_store %arg7[%c0_11, %c0_12], %13 {strides = array<i32>} : memref<16x32xf32, #tpu.memory_space<vmem>>, vector<16x32xf32>,
    } else {
    }
    %c0 = arith.constant 0 : index
    %c0_1 = arith.constant 0 : index
    %3 = vector.load %arg7[%c0, %c0_1] : memref<16x32xf32, #tpu.memory_space<vmem>>, vector<16x32xf32>
    %c0_2 = arith.constant 0 : index
    %c0_3 = arith.constant 0 : index
    %4 = vector.load %arg3[%c0_2, %c0_3] : memref<16x32xf32, #tpu.memory_space<vmem>>, vector<16x32xf32>
    %5 = arith.truncf %4 : vector<16x32xf32> to vector<16x32xbf16>
    %c0_4 = arith.constant 0 : index
    %c0_5 = arith.constant 0 : index
    %6 = vector.load %arg4[%c0_4, %c0_5] : memref<32x32xbf16, #tpu.memory_space<vmem>>, vector<32x32xbf16>
    %cst = arith.constant dense<0.000000e+00> : vector<16x32xf32>
    %7 = tpu.matmul %5, %6, %cst {dimension_numbers = #tpu.dot_dimension_numbers<[1], [0], [0], [1], [0, 0, 1, 1], [], []>} : vector<16x32xbf16>, vector<32x32xbf16>, vector<16x32xf32> -> vector<16x32xf32>
    %8 = arith.addf %3, %7 : vector<16x32xf32>
    %c0_6 = arith.constant 0 : index
    %c0_7 = arith.constant 0 : index
    %9 = vector.load %arg7[%c0_6, %c0_7] : memref<16x32xf32, #tpu.memory_space<vmem>>, vector<16x32xf32>
    tpu.vector_store %arg7[%c0_6, %c0_7], %8 {strides = array<i32>} : memref<16x32xf32, #tpu.memory_space<vmem>>, vector<16x32xf32>,
    %c0_i32_8 = arith.constant 0 : i32
    %10 = arith.cmpi eq, %arg2, %c0_i32_8 : i32
    %11 = arith.extui %10 : i1 to i32
    %c0_i32_9 = arith.constant 0 : i32
    %12 = arith.cmpi ne, %11, %c0_i32_9 : i32
    scf.if %12 {
      %c0_10 = arith.constant 0 : index
      %c0_11 = arith.constant 0 : index
      %13 = vector.load %arg7[%c0_10, %c0_11] : memref<16x32xf32, #tpu.memory_space<vmem>>, vector<16x32xf32>
      %c0_12 = arith.constant 0 : index
      %c0_13 = arith.constant 0 : index
      %14 = vector.load %arg5[%c0_12, %c0_13] : memref<1x32xf32, #tpu.memory_space<vmem>>, vector<1x32xf32>
      %15 = vector.broadcast %14 : vector<1x32xf32> to vector<16x32xf32>
      %16 = arith.addf %13, %15 : vector<16x32xf32>
      %17 = arith.truncf %16 : vector<16x32xf32> to vector<16x32xbf16>
      %c0_14 = arith.constant 0 : index
      %c0_15 = arith.constant 0 : index
      %18 = vector.load %arg6[%c0_14, %c0_15] : memref<16x32xbf16, #tpu.memory_space<vmem>>, vector<16x32xbf16>
      tpu.vector_store %arg6[%c0_14, %c0_15], %17 {strides = array<i32>} : memref<16x32xbf16, #tpu.memory_space<vmem>>, vector<16x32xbf16>,
    } else {
    }
    return
  }
  func.func @transform_0(%arg0: i32, %arg1: i32, %arg2: i32) -> (i32, i32) {
    %c0_i32 = arith.constant 0 : i32
    return %arg0, %arg2 : i32, i32
  }
  func.func @transform_1(%arg0: i32, %arg1: i32, %arg2: i32) -> (i32, i32) {
    %c0_i32 = arith.constant 0 : i32
    return %arg2, %arg1 : i32, i32
  }
  func.func @transform_2(%arg0: i32, %arg1: i32, %arg2: i32) -> (i32, i32) {
    %c0_i32 = arith.constant 0 : i32
    %c0_i32_0 = arith.constant 0 : i32
    return %c0_i32, %arg1 : i32, i32
  }
  func.func @transform_3(%arg0: i32, %arg1: i32, %arg2: i32) -> (i32, i32) {
    %c0_i32 = arith.constant 0 : i32
    return %arg0, %arg1 : i32, i32
  }
}

module attributes {stable_mosaic.version = 11 : i64} {
  func.func @_cross_attn_kernel(%arg0: i32, %arg1: memref<1x8x32xbf16, #tpu.memory_space<vmem>>, %arg2: memref<1x8x64xbf16, #tpu.memory_space<vmem>>, %arg3: memref<1x8x8xbf16, #tpu.memory_space<vmem>>, %arg4: memref<1x8x32xbf16, #tpu.memory_space<vmem>>) attributes {dimension_semantics = [#tpu.dimension_semantics<parallel>], iteration_bounds = array<i64: 2>, scalar_prefetch = 0 : i64, scratch_operands = 0 : i64, tpu.core_type = #tpu.core_type<tc>, window_params = [{transform_indices = @transform_0, window_bounds = array<i64: 1, 8, 32>}, {transform_indices = @transform_1, window_bounds = array<i64: 1, 8, 64>}, {transform_indices = @transform_2, window_bounds = array<i64: 1, 8, 8>}, {transform_indices = @transform_3, window_bounds = array<i64: 1, 8, 32>}]} {
    %c0 = arith.constant 0 : index
    %c0_0 = arith.constant 0 : index
    %c0_1 = arith.constant 0 : index
    %0 = vector.load %arg1[%c0, %c0_0, %c0_1] : memref<1x8x32xbf16, #tpu.memory_space<vmem>>, vector<1x8x32xbf16>
    %1 = vector.shape_cast %0 : vector<1x8x32xbf16> to vector<8x32xbf16>
    %c0_2 = arith.constant 0 : index
    %c0_3 = arith.constant 0 : index
    %c0_4 = arith.constant 0 : index
    %2 = vector.load %arg2[%c0_2, %c0_3, %c0_4] : memref<1x8x64xbf16, #tpu.memory_space<vmem>>, vector<1x8x64xbf16>
    %3 = vector.shape_cast %2 : vector<1x8x64xbf16> to vector<8x64xbf16>
    %c0_5 = arith.constant 0 : index
    %c0_6 = arith.constant 0 : index
    %c0_7 = arith.constant 0 : index
    %4 = vector.load %arg3[%c0_5, %c0_6, %c0_7] : memref<1x8x8xbf16, #tpu.memory_space<vmem>>, vector<1x8x8xbf16>
    %5 = vector.shape_cast %4 : vector<1x8x8xbf16> to vector<8x8xbf16>
    %6 = vector.extract_strided_slice %1 {offsets = [0, 0], sizes = [8, 8], strides = [1, 1]} : vector<8x32xbf16> to vector<8x8xbf16>
    %7 = vector.extract_strided_slice %3 {offsets = [0, 0], sizes = [8, 8], strides = [1, 1]} : vector<8x64xbf16> to vector<8x8xbf16>
    %8 = vector.extract_strided_slice %3 {offsets = [0, 32], sizes = [8, 8], strides = [1, 1]} : vector<8x64xbf16> to vector<8x8xbf16>
    %cst = arith.constant dense<0.000000e+00> : vector<8x8xf32>
    %9 = tpu.matmul %6, %7, %cst {dimension_numbers = #tpu.dot_dimension_numbers<[1], [1], [0], [0], [0, 0, 1, 0], [], []>} : vector<8x8xbf16>, vector<8x8xbf16>, vector<8x8xf32> -> vector<8x8xf32>
    %cst_8 = arith.constant 0.000000e+00 : bf16
    %10 = vector.broadcast %cst_8 : bf16 to vector<8x8xbf16>
    %11 = arith.cmpf oeq, %5, %10 : vector<8x8xbf16>
    %cst_9 = arith.constant -1.000000e+09 : f32
    %12 = vector.broadcast %cst_9 : f32 to vector<8x8xf32>
    %13 = arith.select %11, %12, %9 : vector<8x8xi1>, vector<8x8xf32>
    %cst_10 = arith.constant dense<0xFF800000> : vector<8xf32>
    %14 = vector.multi_reduction <maximumf>, %13, %cst_10 [1] : vector<8x8xf32> to vector<8xf32>
    %15 = vector.shape_cast %14 : vector<8xf32> to vector<8x1xf32>
    %16 = vector.broadcast %15 : vector<8x1xf32> to vector<8x8xf32>
    %17 = arith.subf %13, %16 : vector<8x8xf32>
    %18 = math.exp %17 : vector<8x8xf32>
    %cst_11 = arith.constant dense<0.000000e+00> : vector<8xf32>
    %19 = vector.multi_reduction <add>, %18, %cst_11 [1] : vector<8x8xf32> to vector<8xf32>
    %20 = vector.shape_cast %19 : vector<8xf32> to vector<8x1xf32>
    %21 = tpu.reciprocal %20 {approx = true} : vector<8x1xf32> -> vector<8x1xf32>
    %22 = vector.broadcast %21 : vector<8x1xf32> to vector<8x8xf32>
    %23 = arith.mulf %18, %22 : vector<8x8xf32>
    %24 = arith.truncf %23 : vector<8x8xf32> to vector<8x8xbf16>
    %cst_12 = arith.constant dense<0.000000e+00> : vector<8x8xf32>
    %25 = tpu.matmul %24, %8, %cst_12 {dimension_numbers = #tpu.dot_dimension_numbers<[1], [0], [0], [1], [0, 0, 1, 1], [], []>} : vector<8x8xbf16>, vector<8x8xbf16>, vector<8x8xf32> -> vector<8x8xf32>
    %26 = arith.truncf %25 : vector<8x8xf32> to vector<8x8xbf16>
    %c0_13 = arith.constant 0 : index
    %c0_14 = arith.constant 0 : index
    %c0_15 = arith.constant 0 : index
    %27 = vector.load %arg4[%c0_13, %c0_14, %c0_15] : memref<1x8x32xbf16, #tpu.memory_space<vmem>>, vector<1x8x8xbf16>
    %28 = vector.shape_cast %27 : vector<1x8x8xbf16> to vector<8x8xbf16>
    %29 = vector.shape_cast %26 : vector<8x8xbf16> to vector<1x8x8xbf16>
    tpu.vector_store %arg4[%c0_13, %c0_14, %c0_15], %29 {strides = array<i32>} : memref<1x8x32xbf16, #tpu.memory_space<vmem>>, vector<1x8x8xbf16>,
    %30 = vector.extract_strided_slice %1 {offsets = [0, 8], sizes = [8, 8], strides = [1, 1]} : vector<8x32xbf16> to vector<8x8xbf16>
    %31 = vector.extract_strided_slice %3 {offsets = [0, 8], sizes = [8, 8], strides = [1, 1]} : vector<8x64xbf16> to vector<8x8xbf16>
    %32 = vector.extract_strided_slice %3 {offsets = [0, 40], sizes = [8, 8], strides = [1, 1]} : vector<8x64xbf16> to vector<8x8xbf16>
    %cst_16 = arith.constant dense<0.000000e+00> : vector<8x8xf32>
    %33 = tpu.matmul %30, %31, %cst_16 {dimension_numbers = #tpu.dot_dimension_numbers<[1], [1], [0], [0], [0, 0, 1, 0], [], []>} : vector<8x8xbf16>, vector<8x8xbf16>, vector<8x8xf32> -> vector<8x8xf32>
    %cst_17 = arith.constant 0.000000e+00 : bf16
    %34 = vector.broadcast %cst_17 : bf16 to vector<8x8xbf16>
    %35 = arith.cmpf oeq, %5, %34 : vector<8x8xbf16>
    %cst_18 = arith.constant -1.000000e+09 : f32
    %36 = vector.broadcast %cst_18 : f32 to vector<8x8xf32>
    %37 = arith.select %35, %36, %33 : vector<8x8xi1>, vector<8x8xf32>
    %cst_19 = arith.constant dense<0xFF800000> : vector<8xf32>
    %38 = vector.multi_reduction <maximumf>, %37, %cst_19 [1] : vector<8x8xf32> to vector<8xf32>
    %39 = vector.shape_cast %38 : vector<8xf32> to vector<8x1xf32>
    %40 = vector.broadcast %39 : vector<8x1xf32> to vector<8x8xf32>
    %41 = arith.subf %37, %40 : vector<8x8xf32>
    %42 = math.exp %41 : vector<8x8xf32>
    %cst_20 = arith.constant dense<0.000000e+00> : vector<8xf32>
    %43 = vector.multi_reduction <add>, %42, %cst_20 [1] : vector<8x8xf32> to vector<8xf32>
    %44 = vector.shape_cast %43 : vector<8xf32> to vector<8x1xf32>
    %45 = tpu.reciprocal %44 {approx = true} : vector<8x1xf32> -> vector<8x1xf32>
    %46 = vector.broadcast %45 : vector<8x1xf32> to vector<8x8xf32>
    %47 = arith.mulf %42, %46 : vector<8x8xf32>
    %48 = arith.truncf %47 : vector<8x8xf32> to vector<8x8xbf16>
    %cst_21 = arith.constant dense<0.000000e+00> : vector<8x8xf32>
    %49 = tpu.matmul %48, %32, %cst_21 {dimension_numbers = #tpu.dot_dimension_numbers<[1], [0], [0], [1], [0, 0, 1, 1], [], []>} : vector<8x8xbf16>, vector<8x8xbf16>, vector<8x8xf32> -> vector<8x8xf32>
    %50 = arith.truncf %49 : vector<8x8xf32> to vector<8x8xbf16>
    %c0_22 = arith.constant 0 : index
    %c0_23 = arith.constant 0 : index
    %c8 = arith.constant 8 : index
    %51 = vector.load %arg4[%c0_22, %c0_23, %c8] : memref<1x8x32xbf16, #tpu.memory_space<vmem>>, vector<1x8x8xbf16>
    %52 = vector.shape_cast %51 : vector<1x8x8xbf16> to vector<8x8xbf16>
    %53 = vector.shape_cast %50 : vector<8x8xbf16> to vector<1x8x8xbf16>
    tpu.vector_store %arg4[%c0_22, %c0_23, %c8], %53 {strides = array<i32>} : memref<1x8x32xbf16, #tpu.memory_space<vmem>>, vector<1x8x8xbf16>,
    %54 = vector.extract_strided_slice %1 {offsets = [0, 16], sizes = [8, 8], strides = [1, 1]} : vector<8x32xbf16> to vector<8x8xbf16>
    %55 = vector.extract_strided_slice %3 {offsets = [0, 16], sizes = [8, 8], strides = [1, 1]} : vector<8x64xbf16> to vector<8x8xbf16>
    %56 = vector.extract_strided_slice %3 {offsets = [0, 48], sizes = [8, 8], strides = [1, 1]} : vector<8x64xbf16> to vector<8x8xbf16>
    %cst_24 = arith.constant dense<0.000000e+00> : vector<8x8xf32>
    %57 = tpu.matmul %54, %55, %cst_24 {dimension_numbers = #tpu.dot_dimension_numbers<[1], [1], [0], [0], [0, 0, 1, 0], [], []>} : vector<8x8xbf16>, vector<8x8xbf16>, vector<8x8xf32> -> vector<8x8xf32>
    %cst_25 = arith.constant 0.000000e+00 : bf16
    %58 = vector.broadcast %cst_25 : bf16 to vector<8x8xbf16>
    %59 = arith.cmpf oeq, %5, %58 : vector<8x8xbf16>
    %cst_26 = arith.constant -1.000000e+09 : f32
    %60 = vector.broadcast %cst_26 : f32 to vector<8x8xf32>
    %61 = arith.select %59, %60, %57 : vector<8x8xi1>, vector<8x8xf32>
    %cst_27 = arith.constant dense<0xFF800000> : vector<8xf32>
    %62 = vector.multi_reduction <maximumf>, %61, %cst_27 [1] : vector<8x8xf32> to vector<8xf32>
    %63 = vector.shape_cast %62 : vector<8xf32> to vector<8x1xf32>
    %64 = vector.broadcast %63 : vector<8x1xf32> to vector<8x8xf32>
    %65 = arith.subf %61, %64 : vector<8x8xf32>
    %66 = math.exp %65 : vector<8x8xf32>
    %cst_28 = arith.constant dense<0.000000e+00> : vector<8xf32>
    %67 = vector.multi_reduction <add>, %66, %cst_28 [1] : vector<8x8xf32> to vector<8xf32>
    %68 = vector.shape_cast %67 : vector<8xf32> to vector<8x1xf32>
    %69 = tpu.reciprocal %68 {approx = true} : vector<8x1xf32> -> vector<8x1xf32>
    %70 = vector.broadcast %69 : vector<8x1xf32> to vector<8x8xf32>
    %71 = arith.mulf %66, %70 : vector<8x8xf32>
    %72 = arith.truncf %71 : vector<8x8xf32> to vector<8x8xbf16>
    %cst_29 = arith.constant dense<0.000000e+00> : vector<8x8xf32>
    %73 = tpu.matmul %72, %56, %cst_29 {dimension_numbers = #tpu.dot_dimension_numbers<[1], [0], [0], [1], [0, 0, 1, 1], [], []>} : vector<8x8xbf16>, vector<8x8xbf16>, vector<8x8xf32> -> vector<8x8xf32>
    %74 = arith.truncf %73 : vector<8x8xf32> to vector<8x8xbf16>
    %c0_30 = arith.constant 0 : index
    %c0_31 = arith.constant 0 : index
    %c16 = arith.constant 16 : index
    %75 = vector.load %arg4[%c0_30, %c0_31, %c16] : memref<1x8x32xbf16, #tpu.memory_space<vmem>>, vector<1x8x8xbf16>
    %76 = vector.shape_cast %75 : vector<1x8x8xbf16> to vector<8x8xbf16>
    %77 = vector.shape_cast %74 : vector<8x8xbf16> to vector<1x8x8xbf16>
    tpu.vector_store %arg4[%c0_30, %c0_31, %c16], %77 {strides = array<i32>} : memref<1x8x32xbf16, #tpu.memory_space<vmem>>, vector<1x8x8xbf16>,
    %78 = vector.extract_strided_slice %1 {offsets = [0, 24], sizes = [8, 8], strides = [1, 1]} : vector<8x32xbf16> to vector<8x8xbf16>
    %79 = vector.extract_strided_slice %3 {offsets = [0, 24], sizes = [8, 8], strides = [1, 1]} : vector<8x64xbf16> to vector<8x8xbf16>
    %80 = vector.extract_strided_slice %3 {offsets = [0, 56], sizes = [8, 8], strides = [1, 1]} : vector<8x64xbf16> to vector<8x8xbf16>
    %cst_32 = arith.constant dense<0.000000e+00> : vector<8x8xf32>
    %81 = tpu.matmul %78, %79, %cst_32 {dimension_numbers = #tpu.dot_dimension_numbers<[1], [1], [0], [0], [0, 0, 1, 0], [], []>} : vector<8x8xbf16>, vector<8x8xbf16>, vector<8x8xf32> -> vector<8x8xf32>
    %cst_33 = arith.constant 0.000000e+00 : bf16
    %82 = vector.broadcast %cst_33 : bf16 to vector<8x8xbf16>
    %83 = arith.cmpf oeq, %5, %82 : vector<8x8xbf16>
    %cst_34 = arith.constant -1.000000e+09 : f32
    %84 = vector.broadcast %cst_34 : f32 to vector<8x8xf32>
    %85 = arith.select %83, %84, %81 : vector<8x8xi1>, vector<8x8xf32>
    %cst_35 = arith.constant dense<0xFF800000> : vector<8xf32>
    %86 = vector.multi_reduction <maximumf>, %85, %cst_35 [1] : vector<8x8xf32> to vector<8xf32>
    %87 = vector.shape_cast %86 : vector<8xf32> to vector<8x1xf32>
    %88 = vector.broadcast %87 : vector<8x1xf32> to vector<8x8xf32>
    %89 = arith.subf %85, %88 : vector<8x8xf32>
    %90 = math.exp %89 : vector<8x8xf32>
    %cst_36 = arith.constant dense<0.000000e+00> : vector<8xf32>
    %91 = vector.multi_reduction <add>, %90, %cst_36 [1] : vector<8x8xf32> to vector<8xf32>
    %92 = vector.shape_cast %91 : vector<8xf32> to vector<8x1xf32>
    %93 = tpu.reciprocal %92 {approx = true} : vector<8x1xf32> -> vector<8x1xf32>
    %94 = vector.broadcast %93 : vector<8x1xf32> to vector<8x8xf32>
    %95 = arith.mulf %90, %94 : vector<8x8xf32>
    %96 = arith.truncf %95 : vector<8x8xf32> to vector<8x8xbf16>
    %cst_37 = arith.constant dense<0.000000e+00> : vector<8x8xf32>
    %97 = tpu.matmul %96, %80, %cst_37 {dimension_numbers = #tpu.dot_dimension_numbers<[1], [0], [0], [1], [0, 0, 1, 1], [], []>} : vector<8x8xbf16>, vector<8x8xbf16>, vector<8x8xf32> -> vector<8x8xf32>
    %98 = arith.truncf %97 : vector<8x8xf32> to vector<8x8xbf16>
    %c0_38 = arith.constant 0 : index
    %c0_39 = arith.constant 0 : index
    %c24 = arith.constant 24 : index
    %99 = vector.load %arg4[%c0_38, %c0_39, %c24] : memref<1x8x32xbf16, #tpu.memory_space<vmem>>, vector<1x8x8xbf16>
    %100 = vector.shape_cast %99 : vector<1x8x8xbf16> to vector<8x8xbf16>
    %101 = vector.shape_cast %98 : vector<8x8xbf16> to vector<1x8x8xbf16>
    tpu.vector_store %arg4[%c0_38, %c0_39, %c24], %101 {strides = array<i32>} : memref<1x8x32xbf16, #tpu.memory_space<vmem>>, vector<1x8x8xbf16>,
    return
  }
  func.func @transform_0(%arg0: i32) -> (i32, i32, i32) {
    %c0_i32 = arith.constant 0 : i32
    %c0_i32_0 = arith.constant 0 : i32
    %c0_i32_1 = arith.constant 0 : i32
    return %arg0, %c0_i32, %c0_i32_0 : i32, i32, i32
  }
  func.func @transform_1(%arg0: i32) -> (i32, i32, i32) {
    %c0_i32 = arith.constant 0 : i32
    %c0_i32_0 = arith.constant 0 : i32
    %c0_i32_1 = arith.constant 0 : i32
    return %arg0, %c0_i32, %c0_i32_0 : i32, i32, i32
  }
  func.func @transform_2(%arg0: i32) -> (i32, i32, i32) {
    %c0_i32 = arith.constant 0 : i32
    %c0_i32_0 = arith.constant 0 : i32
    %c0_i32_1 = arith.constant 0 : i32
    return %arg0, %c0_i32, %c0_i32_0 : i32, i32, i32
  }
  func.func @transform_3(%arg0: i32) -> (i32, i32, i32) {
    %c0_i32 = arith.constant 0 : i32
    %c0_i32_0 = arith.constant 0 : i32
    %c0_i32_1 = arith.constant 0 : i32
    return %arg0, %c0_i32, %c0_i32_0 : i32, i32, i32
  }
}

module attributes {stable_mosaic.version = 11 : i64} {
  func.func @_matmul_bias_kernel(%arg0: i32, %arg1: i32, %arg2: i32, %arg3: memref<16x32xf32, #tpu.memory_space<vmem>>, %arg4: memref<32x64xbf16, #tpu.memory_space<vmem>>, %arg5: memref<1x64xf32, #tpu.memory_space<vmem>>, %arg6: memref<16x64xbf16, #tpu.memory_space<vmem>>, %arg7: memref<16x64xf32, #tpu.memory_space<vmem>>) attributes {dimension_semantics = [#tpu.dimension_semantics<parallel>, #tpu.dimension_semantics<parallel>, #tpu.dimension_semantics<arbitrary>], iteration_bounds = array<i64: 1, 1, 1>, scalar_prefetch = 0 : i64, scratch_operands = 1 : i64, tpu.core_type = #tpu.core_type<tc>, window_params = [{transform_indices = @transform_0, window_bounds = array<i64: 16, 32>}, {transform_indices = @transform_1, window_bounds = array<i64: 32, 64>}, {transform_indices = @transform_2, window_bounds = array<i64: 1, 64>}, {transform_indices = @transform_3, window_bounds = array<i64: 16, 64>}]} {
    %c0_i32 = arith.constant 0 : i32
    %0 = arith.cmpi eq, %arg2, %c0_i32 : i32
    %1 = arith.extui %0 : i1 to i32
    %c0_i32_0 = arith.constant 0 : i32
    %2 = arith.cmpi ne, %1, %c0_i32_0 : i32
    scf.if %2 {
      %cst_10 = arith.constant 0.000000e+00 : f32
      %13 = vector.broadcast %cst_10 : f32 to vector<16x64xf32>
      %c0_11 = arith.constant 0 : index
      %c0_12 = arith.constant 0 : index
      %14 = vector.load %arg7[%c0_11, %c0_12] : memref<16x64xf32, #tpu.memory_space<vmem>>, vector<16x64xf32>
      tpu.vector_store %arg7[%c0_11, %c0_12], %13 {strides = array<i32>} : memref<16x64xf32, #tpu.memory_space<vmem>>, vector<16x64xf32>,
    } else {
    }
    %c0 = arith.constant 0 : index
    %c0_1 = arith.constant 0 : index
    %3 = vector.load %arg7[%c0, %c0_1] : memref<16x64xf32, #tpu.memory_space<vmem>>, vector<16x64xf32>
    %c0_2 = arith.constant 0 : index
    %c0_3 = arith.constant 0 : index
    %4 = vector.load %arg3[%c0_2, %c0_3] : memref<16x32xf32, #tpu.memory_space<vmem>>, vector<16x32xf32>
    %5 = arith.truncf %4 : vector<16x32xf32> to vector<16x32xbf16>
    %c0_4 = arith.constant 0 : index
    %c0_5 = arith.constant 0 : index
    %6 = vector.load %arg4[%c0_4, %c0_5] : memref<32x64xbf16, #tpu.memory_space<vmem>>, vector<32x64xbf16>
    %cst = arith.constant dense<0.000000e+00> : vector<16x64xf32>
    %7 = tpu.matmul %5, %6, %cst {dimension_numbers = #tpu.dot_dimension_numbers<[1], [0], [0], [1], [0, 0, 1, 1], [], []>} : vector<16x32xbf16>, vector<32x64xbf16>, vector<16x64xf32> -> vector<16x64xf32>
    %8 = arith.addf %3, %7 : vector<16x64xf32>
    %c0_6 = arith.constant 0 : index
    %c0_7 = arith.constant 0 : index
    %9 = vector.load %arg7[%c0_6, %c0_7] : memref<16x64xf32, #tpu.memory_space<vmem>>, vector<16x64xf32>
    tpu.vector_store %arg7[%c0_6, %c0_7], %8 {strides = array<i32>} : memref<16x64xf32, #tpu.memory_space<vmem>>, vector<16x64xf32>,
    %c0_i32_8 = arith.constant 0 : i32
    %10 = arith.cmpi eq, %arg2, %c0_i32_8 : i32
    %11 = arith.extui %10 : i1 to i32
    %c0_i32_9 = arith.constant 0 : i32
    %12 = arith.cmpi ne, %11, %c0_i32_9 : i32
    scf.if %12 {
      %c0_10 = arith.constant 0 : index
      %c0_11 = arith.constant 0 : index
      %13 = vector.load %arg7[%c0_10, %c0_11] : memref<16x64xf32, #tpu.memory_space<vmem>>, vector<16x64xf32>
      %c0_12 = arith.constant 0 : index
      %c0_13 = arith.constant 0 : index
      %14 = vector.load %arg5[%c0_12, %c0_13] : memref<1x64xf32, #tpu.memory_space<vmem>>, vector<1x64xf32>
      %15 = vector.broadcast %14 : vector<1x64xf32> to vector<16x64xf32>
      %16 = arith.addf %13, %15 : vector<16x64xf32>
      %17 = arith.truncf %16 : vector<16x64xf32> to vector<16x64xbf16>
      %c0_14 = arith.constant 0 : index
      %c0_15 = arith.constant 0 : index
      %18 = vector.load %arg6[%c0_14, %c0_15] : memref<16x64xbf16, #tpu.memory_space<vmem>>, vector<16x64xbf16>
      tpu.vector_store %arg6[%c0_14, %c0_15], %17 {strides = array<i32>} : memref<16x64xbf16, #tpu.memory_space<vmem>>, vector<16x64xbf16>,
    } else {
    }
    return
  }
  func.func @transform_0(%arg0: i32, %arg1: i32, %arg2: i32) -> (i32, i32) {
    %c0_i32 = arith.constant 0 : i32
    return %arg0, %arg2 : i32, i32
  }
  func.func @transform_1(%arg0: i32, %arg1: i32, %arg2: i32) -> (i32, i32) {
    %c0_i32 = arith.constant 0 : i32
    return %arg2, %arg1 : i32, i32
  }
  func.func @transform_2(%arg0: i32, %arg1: i32, %arg2: i32) -> (i32, i32) {
    %c0_i32 = arith.constant 0 : i32
    %c0_i32_0 = arith.constant 0 : i32
    return %c0_i32, %arg1 : i32, i32
  }
  func.func @transform_3(%arg0: i32, %arg1: i32, %arg2: i32) -> (i32, i32) {
    %c0_i32 = arith.constant 0 : i32
    return %arg0, %arg1 : i32, i32
  }
}

module attributes {stable_mosaic.version = 11 : i64} {
  func.func @_ffn_residual_ln_kernel(%arg0: i32, %arg1: i32, %arg2: memref<16x32xf32, #tpu.memory_space<vmem>>, %arg3: memref<32x64xbf16, #tpu.memory_space<vmem>>, %arg4: memref<1x64xf32, #tpu.memory_space<vmem>>, %arg5: memref<64x32xbf16, #tpu.memory_space<vmem>>, %arg6: memref<1x32xf32, #tpu.memory_space<vmem>>, %arg7: memref<1x32xf32, #tpu.memory_space<vmem>>, %arg8: memref<1x32xf32, #tpu.memory_space<vmem>>, %arg9: memref<16x32xf32, #tpu.memory_space<vmem>>, %arg10: memref<16x32xf32, #tpu.memory_space<vmem>>) attributes {dimension_semantics = [#tpu.dimension_semantics<parallel>, #tpu.dimension_semantics<arbitrary>], iteration_bounds = array<i64: 1, 1>, scalar_prefetch = 0 : i64, scratch_operands = 1 : i64, tpu.core_type = #tpu.core_type<tc>, window_params = [{transform_indices = @transform_0, window_bounds = array<i64: 16, 32>}, {transform_indices = @transform_1, window_bounds = array<i64: 32, 64>}, {transform_indices = @transform_2, window_bounds = array<i64: 1, 64>}, {transform_indices = @transform_3, window_bounds = array<i64: 64, 32>}, {pipeline_mode = #tpu.pipeline_mode<synchronous>, transform_indices = @transform_4, window_bounds = array<i64: 1, 32>}, {pipeline_mode = #tpu.pipeline_mode<synchronous>, transform_indices = @transform_5, window_bounds = array<i64: 1, 32>}, {pipeline_mode = #tpu.pipeline_mode<synchronous>, transform_indices = @transform_6, window_bounds = array<i64: 1, 32>}, {transform_indices = @transform_7, window_bounds = array<i64: 16, 32>}]} {
    %c0_i32 = arith.constant 0 : i32
    %0 = arith.cmpi eq, %arg1, %c0_i32 : i32
    %1 = arith.extui %0 : i1 to i32
    %c0_i32_0 = arith.constant 0 : i32
    %2 = arith.cmpi ne, %1, %c0_i32_0 : i32
    scf.if %2 {
      %cst_16 = arith.constant 0.000000e+00 : f32
      %21 = vector.broadcast %cst_16 : f32 to vector<16x32xf32>
      %c0_17 = arith.constant 0 : index
      %c0_18 = arith.constant 0 : index
      %22 = vector.load %arg10[%c0_17, %c0_18] : memref<16x32xf32, #tpu.memory_space<vmem>>, vector<16x32xf32>
      tpu.vector_store %arg10[%c0_17, %c0_18], %21 {strides = array<i32>} : memref<16x32xf32, #tpu.memory_space<vmem>>, vector<16x32xf32>,
    } else {
    }
    %c0 = arith.constant 0 : index
    %c0_1 = arith.constant 0 : index
    %3 = vector.load %arg2[%c0, %c0_1] : memref<16x32xf32, #tpu.memory_space<vmem>>, vector<16x32xf32>
    %4 = arith.truncf %3 : vector<16x32xf32> to vector<16x32xbf16>
    %c0_2 = arith.constant 0 : index
    %c0_3 = arith.constant 0 : index
    %5 = vector.load %arg3[%c0_2, %c0_3] : memref<32x64xbf16, #tpu.memory_space<vmem>>, vector<32x64xbf16>
    %cst = arith.constant dense<0.000000e+00> : vector<16x64xf32>
    %6 = tpu.matmul %4, %5, %cst {dimension_numbers = #tpu.dot_dimension_numbers<[1], [0], [0], [1], [0, 0, 1, 1], [], []>} : vector<16x32xbf16>, vector<32x64xbf16>, vector<16x64xf32> -> vector<16x64xf32>
    %c0_4 = arith.constant 0 : index
    %c0_5 = arith.constant 0 : index
    %7 = vector.load %arg4[%c0_4, %c0_5] : memref<1x64xf32, #tpu.memory_space<vmem>>, vector<1x64xf32>
    %8 = vector.broadcast %7 : vector<1x64xf32> to vector<16x64xf32>
    %9 = arith.addf %6, %8 : vector<16x64xf32>
    %cst_6 = arith.constant 0.000000e+00 : f32
    %10 = vector.broadcast %cst_6 : f32 to vector<16x64xf32>
    %11 = arith.maximumf %9, %10 : vector<16x64xf32>
    %c0_7 = arith.constant 0 : index
    %c0_8 = arith.constant 0 : index
    %12 = vector.load %arg10[%c0_7, %c0_8] : memref<16x32xf32, #tpu.memory_space<vmem>>, vector<16x32xf32>
    %13 = arith.truncf %11 : vector<16x64xf32> to vector<16x64xbf16>
    %c0_9 = arith.constant 0 : index
    %c0_10 = arith.constant 0 : index
    %14 = vector.load %arg5[%c0_9, %c0_10] : memref<64x32xbf16, #tpu.memory_space<vmem>>, vector<64x32xbf16>
    %cst_11 = arith.constant dense<0.000000e+00> : vector<16x32xf32>
    %15 = tpu.matmul %13, %14, %cst_11 {dimension_numbers = #tpu.dot_dimension_numbers<[1], [0], [0], [1], [0, 0, 1, 1], [], []>} : vector<16x64xbf16>, vector<64x32xbf16>, vector<16x32xf32> -> vector<16x32xf32>
    %16 = arith.addf %12, %15 : vector<16x32xf32>
    %c0_12 = arith.constant 0 : index
    %c0_13 = arith.constant 0 : index
    %17 = vector.load %arg10[%c0_12, %c0_13] : memref<16x32xf32, #tpu.memory_space<vmem>>, vector<16x32xf32>
    tpu.vector_store %arg10[%c0_12, %c0_13], %16 {strides = array<i32>} : memref<16x32xf32, #tpu.memory_space<vmem>>, vector<16x32xf32>,
    %c0_i32_14 = arith.constant 0 : i32
    %18 = arith.cmpi eq, %arg1, %c0_i32_14 : i32
    %19 = arith.extui %18 : i1 to i32
    %c0_i32_15 = arith.constant 0 : i32
    %20 = arith.cmpi ne, %19, %c0_i32_15 : i32
    scf.if %20 {
      %c0_16 = arith.constant 0 : index
      %c0_17 = arith.constant 0 : index
      %21 = vector.load %arg10[%c0_16, %c0_17] : memref<16x32xf32, #tpu.memory_space<vmem>>, vector<16x32xf32>
      %c0_18 = arith.constant 0 : index
      %c0_19 = arith.constant 0 : index
      %22 = vector.load %arg6[%c0_18, %c0_19] : memref<1x32xf32, #tpu.memory_space<vmem>>, vector<1x32xf32>
      %23 = vector.broadcast %22 : vector<1x32xf32> to vector<16x32xf32>
      %24 = arith.addf %21, %23 : vector<16x32xf32>
      %25 = arith.addf %24, %3 : vector<16x32xf32>
      %c0_20 = arith.constant 0 : index
      %c0_21 = arith.constant 0 : index
      %26 = vector.load %arg7[%c0_20, %c0_21] : memref<1x32xf32, #tpu.memory_space<vmem>>, vector<1x32xf32>
      %c0_22 = arith.constant 0 : index
      %c0_23 = arith.constant 0 : index
      %27 = vector.load %arg8[%c0_22, %c0_23] : memref<1x32xf32, #tpu.memory_space<vmem>>, vector<1x32xf32>
      %cst_24 = arith.constant dense<0.000000e+00> : vector<16xf32>
      %28 = vector.multi_reduction <add>, %25, %cst_24 [1] : vector<16x32xf32> to vector<16xf32>
      %29 = vector.shape_cast %28 : vector<16xf32> to vector<16x1xf32>
      %cst_25 = arith.constant 3.200000e+01 : f32
      %30 = vector.broadcast %cst_25 : f32 to vector<16x1xf32>
      %31 = arith.divf %29, %30 : vector<16x1xf32>
      %32 = vector.broadcast %31 : vector<16x1xf32> to vector<16x32xf32>
      %33 = arith.subf %25, %32 : vector<16x32xf32>
      %34 = arith.mulf %33, %33 : vector<16x32xf32>
      %cst_26 = arith.constant dense<0.000000e+00> : vector<16xf32>
      %35 = vector.multi_reduction <add>, %34, %cst_26 [1] : vector<16x32xf32> to vector<16xf32>
      %36 = vector.shape_cast %35 : vector<16xf32> to vector<16x1xf32>
      %cst_27 = arith.constant 3.200000e+01 : f32
      %37 = vector.broadcast %cst_27 : f32 to vector<16x1xf32>
      %38 = arith.divf %36, %37 : vector<16x1xf32>
      %39 = vector.broadcast %31 : vector<16x1xf32> to vector<16x32xf32>
      %40 = arith.subf %25, %39 : vector<16x32xf32>
      %cst_28 = arith.constant 9.99999974E-6 : f32
      %41 = vector.broadcast %cst_28 : f32 to vector<16x1xf32>
      %42 = arith.addf %38, %41 : vector<16x1xf32>
      %43 = math.rsqrt %42 : vector<16x1xf32>
      %44 = vector.broadcast %43 : vector<16x1xf32> to vector<16x32xf32>
      %45 = arith.mulf %40, %44 : vector<16x32xf32>
      %46 = vector.broadcast %26 : vector<1x32xf32> to vector<16x32xf32>
      %47 = arith.mulf %45, %46 : vector<16x32xf32>
      %48 = vector.broadcast %27 : vector<1x32xf32> to vector<16x32xf32>
      %49 = arith.addf %47, %48 : vector<16x32xf32>
      %c0_29 = arith.constant 0 : index
      %c0_30 = arith.constant 0 : index
      %50 = vector.load %arg9[%c0_29, %c0_30] : memref<16x32xf32, #tpu.memory_space<vmem>>, vector<16x32xf32>
      tpu.vector_store %arg9[%c0_29, %c0_30], %49 {strides = array<i32>} : memref<16x32xf32, #tpu.memory_space<vmem>>, vector<16x32xf32>,
    } else {
    }
    return
  }
  func.func @transform_0(%arg0: i32, %arg1: i32) -> (i32, i32) {
    %c0_i32 = arith.constant 0 : i32
    %c0_i32_0 = arith.constant 0 : i32
    return %arg0, %c0_i32 : i32, i32
  }
  func.func @transform_1(%arg0: i32, %arg1: i32) -> (i32, i32) {
    %c0_i32 = arith.constant 0 : i32
    %c0_i32_0 = arith.constant 0 : i32
    return %c0_i32, %arg1 : i32, i32
  }
  func.func @transform_2(%arg0: i32, %arg1: i32) -> (i32, i32) {
    %c0_i32 = arith.constant 0 : i32
    %c0_i32_0 = arith.constant 0 : i32
    return %c0_i32, %arg1 : i32, i32
  }
  func.func @transform_3(%arg0: i32, %arg1: i32) -> (i32, i32) {
    %c0_i32 = arith.constant 0 : i32
    %c0_i32_0 = arith.constant 0 : i32
    return %arg1, %c0_i32 : i32, i32
  }
  func.func @transform_4(%arg0: i32, %arg1: i32) -> (i32, i32) {
    %c0_i32 = arith.constant 0 : i32
    %c0_i32_0 = arith.constant 0 : i32
    %c0_i32_1 = arith.constant 0 : i32
    return %c0_i32, %c0_i32_0 : i32, i32
  }
  func.func @transform_5(%arg0: i32, %arg1: i32) -> (i32, i32) {
    %c0_i32 = arith.constant 0 : i32
    %c0_i32_0 = arith.constant 0 : i32
    %c0_i32_1 = arith.constant 0 : i32
    return %c0_i32, %c0_i32_0 : i32, i32
  }
  func.func @transform_6(%arg0: i32, %arg1: i32) -> (i32, i32) {
    %c0_i32 = arith.constant 0 : i32
    %c0_i32_0 = arith.constant 0 : i32
    %c0_i32_1 = arith.constant 0 : i32
    return %c0_i32, %c0_i32_0 : i32, i32
  }
  func.func @transform_7(%arg0: i32, %arg1: i32) -> (i32, i32) {
    %c0_i32 = arith.constant 0 : i32
    %c0_i32_0 = arith.constant 0 : i32
    return %arg0, %c0_i32 : i32, i32
  }
}

</mosaic_0001>

<llo_original>
// kernel: decoder_block_forward.8
$region0: #{decoder_block_forward.8}
  #allocation0 [shape = 'u32[]', space=smem, size = 0x4, offset = 0x4, fixed_abs, tag = 'smem constant byte address 0x4 - core index']
  #allocation1 [shape = 'u32[72,128]{1,0:T(1,128)}', space=vmem, size = 0x9000, scoped, tag = 'internal scratch']
  #allocation2 [shape = 'f32[16,96]{1,0:T(8,128)}', space=vmem, size = 0x2000, scoped, tag = 'scratch operand']
  %s0 = inlined_call_operand.vmem [shape: f32[16,32], index: 0, kind: input, shape index: {}]
  %s1 = inlined_call_operand.vmem [shape: bf16[32,96], index: 1, kind: input, shape index: {}]
  %s2 = inlined_call_operand.vmem [shape: f32[1,96], index: 2, kind: input, shape index: {}]
  %s3 = inlined_call_operand.vmem [shape: bf16[16,96], index: 3, kind: output, shape index: {}]
  %s4 = sld [smem:[#allocation0]]
  $region30: #{decoder_block_forward.8} parent=0
    _
  %s6 = ssub.s32 1, %s4
  %s7 = scalar_select 0, %s6, %s4
  // Predicated region
  $region2: #{decoder_block_forward.8} parent=0 // pred_check
    _
  $region3: #{decoder_block_forward.8} parent=0 // pred_check_branch
    %9 = sbr.rel (0) target = $region5
  $region4: #{decoder_block_forward.8} parent=0 // pred_region
    _
  $region5: #{decoder_block_forward.8} parent=0 // pred_fallthru
    _
  // Predicated region
  $region6: #{decoder_block_forward.8} parent=0 // pred_check
    _
  $region7: #{decoder_block_forward.8} parent=0 // pred_check_branch
    %11 = sbr.rel (0) target = $region9
  $region8: #{decoder_block_forward.8} parent=0 // pred_region
    _
  $region9: #{decoder_block_forward.8} parent=0 // pred_fallthru
    _
  // Predicated region
  $region10: #{decoder_block_forward.8} parent=0 // pred_check
    _
  $region11: #{decoder_block_forward.8} parent=0 // pred_check_branch
    %13 = sbr.rel (0) target = $region13
  $region12: #{decoder_block_forward.8} parent=0 // pred_region
    _
  $region13: #{decoder_block_forward.8} parent=0 // pred_fallthru
    _
  %p15 = scmp.eq.s32.totalorder 0, 0
  // Predicated region
  $region14: #{decoder_block_forward.8} parent=0 // pred_check
    %p16 = pneg %p15
  $region15: #{decoder_block_forward.8} parent=0 // pred_check_branch
    %18 = sbr.rel (%p16) target = $region17
  $region16: #{decoder_block_forward.8} parent=0 // pred_region
    %vm19 = vcmask 785408
    %20 = vst.msk [vmem:[#allocation2] sm:$0xff] %vm19, 0.0
    %21 = vst.msk [vmem:[#allocation2 + $0x8] sm:$0xff] %vm19, 0.0
  $region17: #{decoder_block_forward.8} parent=0 // pred_fallthru
    _
  %v22 = vld [vmem:[#allocation2] sm:$0xff]
  %v23 = vld [vmem:[#allocation2 + $0x8] sm:$0xff]
  %v24 = vld [vmem:[%s0] sm:$0xff]
  %v25 = vld [vmem:[%s0 + $0x8] sm:$0xff]
  %v26 = vpack.c.bf16 %v25, %v24
  %v27 = vld [vmem:[%s1] sm:$0xf]
  %v28 = vld [vmem:[%s1 + $0x4] sm:$0xf]
  %v29 = vld [vmem:[%s1 + $0x8] sm:$0xf]
  %v30 = vld [vmem:[%s1 + $0xc] sm:$0xf]
  %v35 = vunpack.c.l.b16 %v27
  %v36 = vunpack.c.l.b16 %v28
  %v37 = vunpack.c.l.b16 %v29
  %v38 = vunpack.c.l.b16 %v30
  %v39 = vpack.c.b16 %v36, %v35
  %v40 = vpack.c.b16 %v38, %v37
  %vm43 = vcmask 261120
  %v45 = vsel %vm43, %v26, 0
  %47 = vmatpush.bf16.msra.mxu0 0
  %48 = vmatpush.bf16.msra.mxu0 0
  %49 = vmatpush.bf16.msra.mxu0 0
  %50 = vmatpush.bf16.msra.mxu0 0
  %51 = vmatpush.bf16.msra.mxu0 0
  %52 = vmatpush.bf16.msra.mxu0 0
  %53 = vmatpush.bf16.msra.mxu0 %v40
  %54 = vmatpush.bf16.msra.mxu0 %v39
  %55 = vmatmul.bf16.gmra.mxu0 %v45
  %v56 = vpop.f32.mrf.mxu0
  %v57 = vadd.f32 0.0, %v56
  %v58 = vpop.f32.mrf.mxu0
  %v59 = vadd.f32 0.0, %v58
  %60 = vdwg.mxu0
  %v61 = vadd.f32 %v22, %v57
  %v62 = vadd.f32 %v23, %v59
  %vm63 = vcmask 785408
  %64 = vst.msk [vmem:[#allocation2] sm:$0xff] %vm63, %v61
  %65 = vst.msk [vmem:[#allocation2 + $0x8] sm:$0xff] %vm63, %v62
  // Predicated region
  $region18: #{decoder_block_forward.8} parent=0 // pred_check
    %p66 = pneg %p15
  $region19: #{decoder_block_forward.8} parent=0 // pred_check_branch
    %68 = sbr.rel (%p66) target = $region21
  $region20: #{decoder_block_forward.8} parent=0 // pred_region
    %v69 = vld [vmem:[#allocation2] sm:$0xff]
    %v70 = vld [vmem:[#allocation2 + $0x8] sm:$0xff]
    %v71 = vld [vmem:[%s2] sm:$0x1]
    %v73 = vperm.slane %v71, 0
    %v75 = vadd.f32 %v69, %v73
    %v76 = vadd.f32 %v70, %v73
    %v77 = vpack.c.bf16 %v75, %v75
    %v78 = vpack.c.bf16 %v76, %v76
    %vm79 = vcmask 781312
    %80 = vst.msk [vmem:[%s3] sm:$0xf] %vm79, %v77
    %81 = vst.msk [vmem:[%s3 + $0x4] sm:$0xf] %vm79, %v78
  $region21: #{decoder_block_forward.8} parent=0 // pred_fallthru
    _
  // Predicated region
  $region22: #{decoder_block_forward.8} parent=0 // pred_check
    _
  $region23: #{decoder_block_forward.8} parent=0 // pred_check_branch
    %83 = sbr.rel (0) target = $region25
  $region24: #{decoder_block_forward.8} parent=0 // pred_region
    _
  $region25: #{decoder_block_forward.8} parent=0 // pred_fallthru
    _
  // Predicated region
  $region26: #{decoder_block_forward.8} parent=0 // pred_check
    _
  $region27: #{decoder_block_forward.8} parent=0 // pred_check_branch
    %85 = sbr.rel (0) target = $region29
  $region28: #{decoder_block_forward.8} parent=0 // pred_region
    _
  $region29: #{decoder_block_forward.8} parent=0 // pred_fallthru
    _

// kernel: decoder_block_forward.10
$region0: #{decoder_block_forward.10}
  #allocation0 [shape = 'u32[]', space=smem, size = 0x4, offset = 0x4, fixed_abs, tag = 'smem constant byte address 0x4 - core index']
  #allocation1 [shape = 'u32[72,128]{1,0:T(1,128)}', space=vmem, size = 0x9000, scoped, tag = 'internal scratch']
  #allocation2 [shape = 'f32[16,32]{1,0:T(8,128)}', space=vmem, size = 0x2000, scoped, tag = 'scratch operand']
  %s0 = inlined_call_operand.vmem [shape: bf16[16,32], index: 0, kind: input, shape index: {}]
  %s1 = inlined_call_operand.vmem [shape: bf16[32,32], index: 1, kind: input, shape index: {}]
  %s2 = inlined_call_operand.vmem [shape: f32[1,32], index: 2, kind: input, shape index: {}]
  %s3 = inlined_call_operand.vmem [shape: f32[16,32], index: 3, kind: input, shape index: {}]
  %s4 = inlined_call_operand.vmem [shape: f32[1,32], index: 4, kind: input, shape index: {}]
  %s5 = inlined_call_operand.vmem [shape: f32[1,32], index: 5, kind: input, shape index: {}]
  %s6 = inlined_call_operand.vmem [shape: f32[16,32], index: 6, kind: output, shape index: {}]
  %s7 = sld [smem:[#allocation0]]
  $region42: #{decoder_block_forward.10} parent=0
    _
  %s9 = ssub.s32 1, %s7
  %s10 = scalar_select 0, %s9, %s7
  // Predicated region
  $region2: #{decoder_block_forward.10} parent=0 // pred_check
    _
  $region3: #{decoder_block_forward.10} parent=0 // pred_check_branch
    %12 = sbr.rel (0) target = $region5
  $region4: #{decoder_block_forward.10} parent=0 // pred_region
    _
  $region5: #{decoder_block_forward.10} parent=0 // pred_fallthru
    _
  // Predicated region
  $region6: #{decoder_block_forward.10} parent=0 // pred_check
    _
  $region7: #{decoder_block_forward.10} parent=0 // pred_check_branch
    %14 = sbr.rel (0) target = $region9
  $region8: #{decoder_block_forward.10} parent=0 // pred_region
    _
  $region9: #{decoder_block_forward.10} parent=0 // pred_fallthru
    _
  // Predicated region
  $region10: #{decoder_block_forward.10} parent=0 // pred_check
    _
  $region11: #{decoder_block_forward.10} parent=0 // pred_check_branch
    %16 = sbr.rel (0) target = $region13
  $region12: #{decoder_block_forward.10} parent=0 // pred_region
    _
  $region13: #{decoder_block_forward.10} parent=0 // pred_fallthru
    _
  // Predicated region
  $region14: #{decoder_block_forward.10} parent=0 // pred_check
    _
  $region15: #{decoder_block_forward.10} parent=0 // pred_check_branch
    %18 = sbr.rel (0) target = $region17
  $region16: #{decoder_block_forward.10} parent=0 // pred_region
    _
  $region17: #{decoder_block_forward.10} parent=0 // pred_fallthru
    _
  // Predicated region
  $region18: #{decoder_block_forward.10} parent=0 // pred_check
    _
  $region19: #{decoder_block_forward.10} parent=0 // pred_check_branch
    %20 = sbr.rel (0) target = $region21
  $region20: #{decoder_block_forward.10} parent=0 // pred_region
    _
  $region21: #{decoder_block_forward.10} parent=0 // pred_fallthru
    _
  // Predicated region
  $region22: #{decoder_block_forward.10} parent=0 // pred_check
    _
  $region23: #{decoder_block_forward.10} parent=0 // pred_check_branch
    %22 = sbr.rel (0) target = $region25
  $region24: #{decoder_block_forward.10} parent=0 // pred_region
    _
  $region25: #{decoder_block_forward.10} parent=0 // pred_fallthru
    _
  %p24 = scmp.eq.s32.totalorder 0, 0
  // Predicated region
  $region26: #{decoder_block_forward.10} parent=0 // pred_check
    %p25 = pneg %p24
  $region27: #{decoder_block_forward.10} parent=0 // pred_check_branch
    %27 = sbr.rel (%p25) target = $region29
  $region28: #{decoder_block_forward.10} parent=0 // pred_region
    %vm28 = vcmask 261120
    %29 = vst.msk [vmem:[#allocation2] sm:$0xff] %vm28, 0.0
    %30 = vst.msk [vmem:[#allocation2 + $0x8] sm:$0xff] %vm28, 0.0
  $region29: #{decoder_block_forward.10} parent=0 // pred_fallthru
    _
  %v31 = vld [vmem:[#allocation2] sm:$0xff]
  %v32 = vld [vmem:[#allocation2 + $0x8] sm:$0xff]
  %v33 = vld [vmem:[%s0] sm:$0xf]
  %v34 = vld [vmem:[%s0 + $0x4] sm:$0xf]
  %v35 = vld [vmem:[%s1] sm:$0xf]
  %v36 = vld [vmem:[%s1 + $0x4] sm:$0xf]
  %v37 = vld [vmem:[%s1 + $0x8] sm:$0xf]
  %v38 = vld [vmem:[%s1 + $0xc] sm:$0xf]
  %v41 = vunpack.c.l.b16 %v33
  %v42 = vunpack.c.l.b16 %v34
  %v43 = vpack.c.b16 %v42, %v41
  %v48 = vunpack.c.l.b16 %v35
  %v49 = vunpack.c.l.b16 %v36
  %v50 = vunpack.c.l.b16 %v37
  %v51 = vunpack.c.l.b16 %v38
  %v52 = vpack.c.b16 %v49, %v48
  %v53 = vpack.c.b16 %v51, %v50
  %vm56 = vcmask 261120
  %v58 = vsel %vm56, %v43, 0
  %60 = vmatpush.bf16.msra.mxu0 0
  %61 = vmatpush.bf16.msra.mxu0 0
  %62 = vmatpush.bf16.msra.mxu0 0
  %63 = vmatpush.bf16.msra.mxu0 0
  %64 = vmatpush.bf16.msra.mxu0 0
  %65 = vmatpush.bf16.msra.mxu0 0
  %66 = vmatpush.bf16.msra.mxu0 %v53
  %67 = vmatpush.bf16.msra.mxu0 %v52
  %68 = vmatmul.bf16.gmra.mxu0 %v58
  %v69 = vpop.f32.mrf.mxu0
  %v70 = vadd.f32 0.0, %v69
  %v71 = vpop.f32.mrf.mxu0
  %v72 = vadd.f32 0.0, %v71
  %73 = vdwg.mxu0
  %v74 = vadd.f32 %v31, %v70
  %v75 = vadd.f32 %v32, %v72
  %76 = vst.msk [vmem:[#allocation2] sm:$0xff] %vm56, %v74
  %77 = vst.msk [vmem:[#allocation2 + $0x8] sm:$0xff] %vm56, %v75
  // Predicated region
  $region30: #{decoder_block_forward.10} parent=0 // pred_check
    %p78 = pneg %p24
  $region31: #{decoder_block_forward.10} parent=0 // pred_check_branch
    %80 = sbr.rel (%p78) target = $region33
  $region32: #{decoder_block_forward.10} parent=0 // pred_region
    %v81 = vld [vmem:[#allocation2] sm:$0xff]
    %v82 = vld [vmem:[#allocation2 + $0x8] sm:$0xff]
    %v83 = vld [vmem:[%s2] sm:$0x1]
    %v85 = vperm.slane %v83, 0
    %v87 = vadd.f32 %v81, %v85
    %v88 = vadd.f32 %v82, %v85
    %v89 = vld [vmem:[%s3] sm:$0xff]
    %v90 = vld [vmem:[%s3 + $0x8] sm:$0xff]
    %v91 = vadd.f32 %v87, %v89
    %v92 = vadd.f32 %v88, %v90
    %v93 = vld [vmem:[%s4] sm:$0x1]
    %v94 = vld [vmem:[%s5] sm:$0x1]
    %v95 = vsel %vm56, %v91, 0.0
    %96 = vadd.xlane.f32.xlu0 %v95
    %v97 = vpop.xlane.xlu0 %96
    %v98 = vsel %vm56, %v92, 0.0
    %99 = vadd.xlane.f32.xlu0 %v98
    %v100 = vpop.xlane.xlu0 %99
    %v101 = vrcp.pop 32.0
    %v102 = vmul.f32 32.0, %v101
    %v103 = vsub.f32 1.0, %v102
    %v104 = vmul.f32 %v101, %v103
    %v105 = vadd.f32 %v101, %v104
    %vm106 = vweird.f32 %v101
    %v107 = vsel %vm106, %v101, %v105
    %v108 = vmul.f32 %v97, %v107
    %v109 = vmul.f32 %v100, %v107
    %v110 = vsub.f32 %v91, %v108
    %v111 = vsub.f32 %v92, %v109
    %v112 = vmul.f32 %v110, %v110
    %v113 = vmul.f32 %v111, %v111
    %v114 = vsel %vm56, %v112, 0.0
    %115 = vadd.xlane.f32.xlu0 %v114
    %v116 = vpop.xlane.xlu0 %115
    %v117 = vsel %vm56, %v113, 0.0
    %118 = vadd.xlane.f32.xlu0 %v117
    %v119 = vpop.xlane.xlu0 %118
    %v120 = vmul.f32 %v116, %v107
    %v121 = vmul.f32 %v119, %v107
    %v122 = vadd.f32 %v120, 1e-05
    %v123 = vadd.f32 %v121, 1e-05
    %v124 = vrsqrt.pop %v122
    %v125 = vmul.f32 %v124, %v122
    %v126 = vmul.f32 %v125, %v124
    %v127 = vmul.f32 0.5, %v126
    %v128 = vsub.f32 1.5, %v127
    %v129 = vmul.f32 %v124, %v128
    %vm130 = vweird.f32 %v122
    %vm131 = vweird.f32 %v124
    %vm132 = vmor %vm130, %vm131
    %v133 = vsel %vm132, %v124, %v129
    %v134 = vrsqrt.pop %v123
    %v135 = vmul.f32 %v134, %v123
    %v136 = vmul.f32 %v135, %v134
    %v137 = vmul.f32 0.5, %v136
    %v138 = vsub.f32 1.5, %v137
    %v139 = vmul.f32 %v134, %v138
    %vm140 = vweird.f32 %v123
    %vm141 = vweird.f32 %v134
    %vm142 = vmor %vm140, %vm141
    %v143 = vsel %vm142, %v134, %v139
    %v144 = vmul.f32 %v110, %v133
    %v145 = vmul.f32 %v111, %v143
    %v147 = vperm.slane %v93, 0
    %v149 = vmul.f32 %v144, %v147
    %v150 = vmul.f32 %v145, %v147
    %v152 = vperm.slane %v94, 0
    %v154 = vadd.f32 %v149, %v152
    %v155 = vadd.f32 %v150, %v152
    %156 = vst.msk [vmem:[%s6] sm:$0xff] %vm56, %v154
    %157 = vst.msk [vmem:[%s6 + $0x8] sm:$0xff] %vm56, %v155
  $region33: #{decoder_block_forward.10} parent=0 // pred_fallthru
    _
  // Predicated region
  $region34: #{decoder_block_forward.10} parent=0 // pred_check
    _
  $region35: #{decoder_block_forward.10} parent=0 // pred_check_branch
    %159 = sbr.rel (0) target = $region37
  $region36: #{decoder_block_forward.10} parent=0 // pred_region
    _
  $region37: #{decoder_block_forward.10} parent=0 // pred_fallthru
    _
  // Predicated region
  $region38: #{decoder_block_forward.10} parent=0 // pred_check
    _
  $region39: #{decoder_block_forward.10} parent=0 // pred_check_branch
    %161 = sbr.rel (0) target = $region41
  $region40: #{decoder_block_forward.10} parent=0 // pred_region
    _
  $region41: #{decoder_block_forward.10} parent=0 // pred_fallthru
    _

// kernel: decoder_block_forward.11
$region0: #{decoder_block_forward.11}
  #allocation0 [shape = 'u32[]', space=smem, size = 0x4, offset = 0x4, fixed_abs, tag = 'smem constant byte address 0x4 - core index']
  #allocation1 [shape = 'u32[72,128]{1,0:T(1,128)}', space=vmem, size = 0x9000, scoped, tag = 'internal scratch']
  #allocation2 [shape = 'f32[16,32]{1,0:T(8,128)}', space=vmem, size = 0x2000, scoped, tag = 'scratch operand']
  %s0 = inlined_call_operand.vmem [shape: f32[16,32], index: 0, kind: input, shape index: {}]
  %s1 = inlined_call_operand.vmem [shape: bf16[32,32], index: 1, kind: input, shape index: {}]
  %s2 = inlined_call_operand.vmem [shape: f32[1,32], index: 2, kind: input, shape index: {}]
  %s3 = inlined_call_operand.vmem [shape: bf16[16,32], index: 3, kind: output, shape index: {}]
  %s4 = sld [smem:[#allocation0]]
  $region30: #{decoder_block_forward.11} parent=0
    _
  %s6 = ssub.s32 1, %s4
  %s7 = scalar_select 0, %s6, %s4
  // Predicated region
  $region2: #{decoder_block_forward.11} parent=0 // pred_check
    _
  $region3: #{decoder_block_forward.11} parent=0 // pred_check_branch
    %9 = sbr.rel (0) target = $region5
  $region4: #{decoder_block_forward.11} parent=0 // pred_region
    _
  $region5: #{decoder_block_forward.11} parent=0 // pred_fallthru
    _
  // Predicated region
  $region6: #{decoder_block_forward.11} parent=0 // pred_check
    _
  $region7: #{decoder_block_forward.11} parent=0 // pred_check_branch
    %11 = sbr.rel (0) target = $region9
  $region8: #{decoder_block_forward.11} parent=0 // pred_region
    _
  $region9: #{decoder_block_forward.11} parent=0 // pred_fallthru
    _
  // Predicated region
  $region10: #{decoder_block_forward.11} parent=0 // pred_check
    _
  $region11: #{decoder_block_forward.11} parent=0 // pred_check_branch
    %13 = sbr.rel (0) target = $region13
  $region12: #{decoder_block_forward.11} parent=0 // pred_region
    _
  $region13: #{decoder_block_forward.11} parent=0 // pred_fallthru
    _
  %p15 = scmp.eq.s32.totalorder 0, 0
  // Predicated region
  $region14: #{decoder_block_forward.11} parent=0 // pred_check
    %p16 = pneg %p15
  $region15: #{decoder_block_forward.11} parent=0 // pred_check_branch
    %18 = sbr.rel (%p16) target = $region17
  $region16: #{decoder_block_forward.11} parent=0 // pred_region
    %vm19 = vcmask 261120
    %20 = vst.msk [vmem:[#allocation2] sm:$0xff] %vm19, 0.0
    %21 = vst.msk [vmem:[#allocation2 + $0x8] sm:$0xff] %vm19, 0.0
  $region17: #{decoder_block_forward.11} parent=0 // pred_fallthru
    _
  %v22 = vld [vmem:[#allocation2] sm:$0xff]
  %v23 = vld [vmem:[#allocation2 + $0x8] sm:$0xff]
  %v24 = vld [vmem:[%s0] sm:$0xff]
  %v25 = vld [vmem:[%s0 + $0x8] sm:$0xff]
  %v26 = vpack.c.bf16 %v25, %v24
  %v27 = vld [vmem:[%s1] sm:$0xf]
  %v28 = vld [vmem:[%s1 + $0x4] sm:$0xf]
  %v29 = vld [vmem:[%s1 + $0x8] sm:$0xf]
  %v30 = vld [vmem:[%s1 + $0xc] sm:$0xf]
  %v35 = vunpack.c.l.b16 %v27
  %v36 = vunpack.c.l.b16 %v28
  %v37 = vunpack.c.l.b16 %v29
  %v38 = vunpack.c.l.b16 %v30
  %v39 = vpack.c.b16 %v36, %v35
  %v40 = vpack.c.b16 %v38, %v37
  %vm43 = vcmask 261120
  %v45 = vsel %vm43, %v26, 0
  %47 = vmatpush.bf16.msra.mxu0 0
  %48 = vmatpush.bf16.msra.mxu0 0
  %49 = vmatpush.bf16.msra.mxu0 0
  %50 = vmatpush.bf16.msra.mxu0 0
  %51 = vmatpush.bf16.msra.mxu0 0
  %52 = vmatpush.bf16.msra.mxu0 0
  %53 = vmatpush.bf16.msra.mxu0 %v40
  %54 = vmatpush.bf16.msra.mxu0 %v39
  %55 = vmatmul.bf16.gmra.mxu0 %v45
  %v56 = vpop.f32.mrf.mxu0
  %v57 = vadd.f32 0.0, %v56
  %v58 = vpop.f32.mrf.mxu0
  %v59 = vadd.f32 0.0, %v58
  %60 = vdwg.mxu0
  %v61 = vadd.f32 %v22, %v57
  %v62 = vadd.f32 %v23, %v59
  %63 = vst.msk [vmem:[#allocation2] sm:$0xff] %vm43, %v61
  %64 = vst.msk [vmem:[#allocation2 + $0x8] sm:$0xff] %vm43, %v62
  // Predicated region
  $region18: #{decoder_block_forward.11} parent=0 // pred_check
    %p65 = pneg %p15
  $region19: #{decoder_block_forward.11} parent=0 // pred_check_branch
    %67 = sbr.rel (%p65) target = $region21
  $region20: #{decoder_block_forward.11} parent=0 // pred_region
    %v68 = vld [vmem:[#allocation2] sm:$0xff]
    %v69 = vld [vmem:[#allocation2 + $0x8] sm:$0xff]
    %v70 = vld [vmem:[%s2] sm:$0x1]
    %v72 = vperm.slane %v70, 0
    %v74 = vadd.f32 %v68, %v72
    %v75 = vadd.f32 %v69, %v72
    %v76 = vpack.c.bf16 %v74, %v74
    %v77 = vpack.c.bf16 %v75, %v75
    %vm78 = vcmask 257024
    %79 = vst.msk [vmem:[%s3] sm:$0xf] %vm78, %v76
    %80 = vst.msk [vmem:[%s3 + $0x4] sm:$0xf] %vm78, %v77
  $region21: #{decoder_block_forward.11} parent=0 // pred_fallthru
    _
  // Predicated region
  $region22: #{decoder_block_forward.11} parent=0 // pred_check
    _
  $region23: #{decoder_block_forward.11} parent=0 // pred_check_branch
    %82 = sbr.rel (0) target = $region25
  $region24: #{decoder_block_forward.11} parent=0 // pred_region
    _
  $region25: #{decoder_block_forward.11} parent=0 // pred_fallthru
    _
  // Predicated region
  $region26: #{decoder_block_forward.11} parent=0 // pred_check
    _
  $region27: #{decoder_block_forward.11} parent=0 // pred_check_branch
    %84 = sbr.rel (0) target = $region29
  $region28: #{decoder_block_forward.11} parent=0 // pred_region
    _
  $region29: #{decoder_block_forward.11} parent=0 // pred_fallthru
    _

// kernel: decoder_block_forward.9
$region0: #{decoder_block_forward.9}
  #allocation0 [shape = 'u32[]', space=smem, size = 0x4, offset = 0x4, fixed_abs, tag = 'smem constant byte address 0x4 - core index']
  #allocation1 [shape = 'u32[72,128]{1,0:T(1,128)}', space=vmem, size = 0x9000, scoped, tag = 'internal scratch']
  %s0 = inlined_call_operand.vmem [shape: bf16[2,8,96], index: 0, kind: input, shape index: {}]
  %s1 = inlined_call_operand.vmem [shape: bf16[2,8,8], index: 1, kind: input, shape index: {}]
  %s2 = inlined_call_operand.vmem [shape: bf16[2,8,32], index: 2, kind: output, shape index: {}]
  %s3 = sld [smem:[#allocation0]]
  $region41: #{decoder_block_forward.9} parent=0
    _
  %s5 = ssub.s32 1, %s3
  %s6 = scalar_select 0, %s5, %s3
  loop: start=0, step=1, limit=4
  $region2: #{decoder_block_forward.9} parent=0 // loop_pre_header
    _
  $region3: #{decoder_block_forward.9} parent=0 // loop_header
    %s8 = sphi 0, %s12
    %p9 = scmp.ge.s32.totalorder %s8, 4
    %s18 = sphi 0, %s20
    %s21 = sphi 0, %s18
    %s22 = sphi 0, %s21
    %s38 = sphi 0, %s22
    %s44 = sphi 0, %s46
    %s47 = sphi 0, %s44
    %s48 = sphi 0, %s47
    %s64 = sphi 0, %s48
    %s70 = sphi 0, %s72
    %s73 = sphi 0, %s70
    %s74 = sphi 0, %s73
    %s90 = sphi 0, %s74
  $region4: #{decoder_block_forward.9} parent=0 // loop_header_branch
    %11 = sbr.rel (%p9) target = $region8
  $region5: #{decoder_block_forward.9} parent=0 // loop_body
    %s13 = ssub.s32 %s8, 1
    %s14 = ssub.s32 %s8, 2
    %s15 = sadd.s32 %s8, 1
    %s16 = ssub.s32 %s8, %s15
    %p17 = scmp.eq.s32.totalorder %s16, 0
    %s19 = sadd.s32 %s18, 1
    %s20 = scalar_select %p17, %s18, %s19
    %p23 = pneg %p17
    %p24 = scmp.eq.s32.totalorder %s8, 1
    %p25 = por %p23, %p24
    %p26 = scmp.ne.s32.totalorder %s18, %s21
    %p27 = scmp.eq.s32.totalorder %s8, 0
    %p28 = por %p26, %p27
    %p29 = scmp.ne.s32.totalorder %s18, %s21
    %p30 = scmp.eq.s32.totalorder %s13, 1
    %p31 = por %p29, %p30
    %p32 = scmp.ne.s32.totalorder %s21, %s22
    %p33 = scmp.eq.s32.totalorder %s13, 0
    %p34 = por %p32, %p33
    %p35 = scmp.ne.s32.totalorder %s21, %s22
    %p36 = scmp.eq.s32.totalorder %s14, 1
    %p37 = por %p35, %p36
    %p39 = scmp.ne.s32.totalorder %s22, %s38
    %p40 = scmp.eq.s32.totalorder %s14, 0
    %p41 = por %p39, %p40
    %s42 = ssub.s32 %s8, %s15
    %p43 = scmp.eq.s32.totalorder %s42, 0
    %s45 = sadd.s32 %s44, 1
    %s46 = scalar_select %p43, %s44, %s45
    %p49 = pneg %p43
    %p50 = scmp.eq.s32.totalorder %s8, 1
    %p51 = por %p49, %p50
    %p52 = scmp.ne.s32.totalorder %s44, %s47
    %p53 = scmp.eq.s32.totalorder %s8, 0
    %p54 = por %p52, %p53
    %p55 = scmp.ne.s32.totalorder %s44, %s47
    %p56 = scmp.eq.s32.totalorder %s13, 1
    %p57 = por %p55, %p56
    %p58 = scmp.ne.s32.totalorder %s47, %s48
    %p59 = scmp.eq.s32.totalorder %s13, 0
    %p60 = por %p58, %p59
    %p61 = scmp.ne.s32.totalorder %s47, %s48
    %p62 = scmp.eq.s32.totalorder %s14, 1
    %p63 = por %p61, %p62
    %p65 = scmp.ne.s32.totalorder %s48, %s64
    %p66 = scmp.eq.s32.totalorder %s14, 0
    %p67 = por %p65, %p66
    %s68 = ssub.s32 %s8, %s15
    %p69 = scmp.eq.s32.totalorder %s68, 0
    %s71 = sadd.s32 %s70, 1
    %s72 = scalar_select %p69, %s70, %s71
    %p75 = pneg %p69
    %p76 = scmp.eq.s32.totalorder %s8, 1
    %p77 = por %p75, %p76
    %p78 = scmp.ne.s32.totalorder %s70, %s73
    %p79 = scmp.eq.s32.totalorder %s8, 0
    %p80 = por %p78, %p79
    %p81 = scmp.ne.s32.totalorder %s70, %s73
    %p82 = scmp.eq.s32.totalorder %s13, 1
    %p83 = por %p81, %p82
    %p84 = scmp.ne.s32.totalorder %s73, %s74
    %p85 = scmp.eq.s32.totalorder %s13, 0
    %p86 = por %p84, %p85
    %p87 = scmp.ne.s32.totalorder %s73, %s74
    %p88 = scmp.eq.s32.totalorder %s14, 1
    %p89 = por %p87, %p88
    %p91 = scmp.ne.s32.totalorder %s74, %s90
    %p92 = scmp.eq.s32.totalorder %s14, 0
    %p93 = por %p91, %p92
    %p94 = scmp.le.s32.totalorder 1, %s8
    %p95 = scmp.lt.s32.totalorder %s8, 3
    %p96 = pnand %p94, %p95
    %p97 = pneg %p96
    // Predicated region
    $region9: #{decoder_block_forward.9} parent=5 // pred_check
      _
    $region10: #{decoder_block_forward.9} parent=5 // pred_check_branch
      %99 = sbr.rel (%p96) target = $region12
    $region11: #{decoder_block_forward.9} parent=5 // pred_region
      %s100 = ssub.s32 %s8, 1
    $region12: #{decoder_block_forward.9} parent=5 // pred_fallthru
      _
    %p101 = scmp.lt.s32.totalorder %s8, 2
    // Predicated region
    $region13: #{decoder_block_forward.9} parent=5 // pred_check
      %p102 = pneg %p101
    $region14: #{decoder_block_forward.9} parent=5 // pred_check_branch
      %104 = sbr.rel (%p102) target = $region16
    $region15: #{decoder_block_forward.9} parent=5 // pred_region
      // Predicated region
      $region17: #{decoder_block_forward.9} parent=15 // pred_check
        %p105 = pneg %p28
      $region18: #{decoder_block_forward.9} parent=15 // pred_check_branch
        %107 = sbr.rel (%p105) target = $region20
      $region19: #{decoder_block_forward.9} parent=15 // pred_region
        %p108 = scmp.lt.s32.totalorder %s8, 1
        %s109 = scalar_select %p108, %s8, 1
        %s110 = smul.addr %s109, 4
        %s111 = scalar_lea.vmem %s0, %s110
      $region20: #{decoder_block_forward.9} parent=15 // pred_fallthru
        _
      // Predicated region
      $region21: #{decoder_block_forward.9} parent=15 // pred_check
        %p112 = pneg %p54
      $region22: #{decoder_block_forward.9} parent=15 // pred_check_branch
        %114 = sbr.rel (%p112) target = $region24
      $region23: #{decoder_block_forward.9} parent=15 // pred_region
        %p115 = scmp.lt.s32.totalorder %s8, 1
        %s116 = scalar_select %p115, %s8, 1
        %s117 = smul.addr %s116, 4
        %s118 = scalar_lea.vmem %s1, %s117
      $region24: #{decoder_block_forward.9} parent=15 // pred_fallthru
        _
    $region16: #{decoder_block_forward.9} parent=5 // pred_fallthru
      _
    %p119 = scmp.le.s32.totalorder 1, %s8
    %p120 = scmp.lt.s32.totalorder %s8, 3
    %p121 = pnand %p119, %p120
    %p122 = pneg %p121
    // Predicated region
    $region25: #{decoder_block_forward.9} parent=5 // pred_check
      _
    $region26: #{decoder_block_forward.9} parent=5 // pred_check_branch
      %124 = sbr.rel (%p121) target = $region28
    $region27: #{decoder_block_forward.9} parent=5 // pred_region
      %s125 = ssub.s32 %s8, 1
      %p126 = scmp.lt.s32.totalorder %s13, 1
      %s127 = scalar_select %p126, %s13, 1
      %s128 = smul.addr %s127, 4
      %s129 = scalar_lea.vmem %s0, %s128
      %p130 = pneg %p34
      %p131 = pneg %p31
      %p132 = scmp.lt.s32.totalorder %s13, 1
      %s133 = scalar_select %p132, %s13, 1
      %s134 = smul.addr %s133, 4
      %s135 = scalar_lea.vmem %s1, %s134
      %p136 = pneg %p60
      %p137 = pneg %p57
      %p138 = pneg %p86
      %p139 = pneg %p83
      %p140 = scmp.lt.s32.totalorder %s13, 1
      %s141 = scalar_select %p140, %s13, 1
      %s142 = smul.addr %s141, 4
      %s143 = scalar_lea.vmem %s2, %s142
      %p144 = scmp.lt.s32.totalorder %s13, 1
      %s145 = scalar_select %p144, %s13, 1
      %s146 = smul.addr %s145, 4
      %s147 = scalar_lea.vmem %s0, %s146
      %p148 = scmp.lt.s32.totalorder %s13, 1
      %s149 = scalar_select %p148, %s13, 1
      %s150 = smul.addr %s149, 4
      %s151 = scalar_lea.vmem %s1, %s150
      %p152 = scmp.lt.s32.totalorder %s13, 1
      %s153 = scalar_select %p152, %s13, 1
      %s154 = smul.addr %s153, 4
      %s155 = scalar_lea.vmem %s2, %s154
      %v157 = vld [vmem:[%s147] sm:$0xf]
      %v158 = vld [vmem:[%s151] sm:$0xf]
      %v160 = vunpack.c.l.b16 %v157
      %v161 = vpack.c.b16 %v160, %v160
      %162 = vrot.lane.b32.xlu0 %v161, 96
      %v163 = vpop.permute.xlu0 %162
      %vm164 = vcmask 64512
      %v166 = vsel %vm164, %v157, 0
      %v169 = vsel %vm164, %v163, 0
      %171 = vmatpush.bf16.xpose.msra.mxu0 0
      %172 = vmatpush.bf16.xpose.msra.mxu0 0
      %173 = vmatpush.bf16.xpose.msra.mxu0 0
      %174 = vmatpush.bf16.xpose.msra.mxu0 0
      %175 = vmatpush.bf16.xpose.msra.mxu0 0
      %176 = vmatpush.bf16.xpose.msra.mxu0 0
      %177 = vmatpush.bf16.xpose.msra.mxu0 0
      %178 = vmatpush.bf16.xpose.msra.mxu0 %v169
      %179 = vmatmul.bf16.gmra.mxu0 %v166
      %v180 = vpop.f32.mrf.mxu0
      %v181 = vadd.f32 0.0, %v180
      %v182 = vpop.f32.mrf.mxu0
      %183 = vdwg.mxu0
      %v184 = vunpack.c.l.bf16 %v158
      %vm185 = vcmp.eq.f32.partialorder %v184, 0.0
      %v186 = vsel %vm185, -1e+09, %v181
      %v187 = vsel %vm164, %v186, -inf
      %188 = vmax.xlane.f32.xlu0 %v187
      %v189 = vpop.xlane.xlu0 %188
      %v190 = vsub.f32 %v186, %v189
      %v191 = vmul.f32 %v190, 1.442695
      %v192 = vpow.pop %v191
      %v193 = vsel %vm164, %v192, 0.0
      %194 = vadd.xlane.f32.xlu0 %v193
      %v195 = vpop.xlane.xlu0 %194
      %v196 = vrcp.pop %v195
      %v197 = vmul.f32 %v192, %v196
      %v198 = vpack.c.bf16 %v197, %v197
      %199 = vrot.lane.b32.xlu0 %v161, 64
      %v200 = vpop.permute.xlu0 %199
      %v202 = vsel %vm164, %v198, 0
      %vm204 = vcmask 1043456
      %v206 = vsel %vm204, %v200, 0
      %208 = vmatpush.bf16.msra.mxu0 0
      %209 = vmatpush.bf16.msra.mxu0 0
      %210 = vmatpush.bf16.msra.mxu0 0
      %211 = vmatpush.bf16.msra.mxu0 0
      %212 = vmatpush.bf16.msra.mxu0 0
      %213 = vmatpush.bf16.msra.mxu0 0
      %214 = vmatpush.bf16.msra.mxu0 0
      %215 = vmatpush.bf16.msra.mxu0 %v206
      %216 = vmatmul.bf16.gmra.mxu0 %v202
      %v217 = vpop.f32.mrf.mxu0
      %v218 = vadd.f32 0.0, %v217
      %v219 = vpop.f32.mrf.mxu0
      %220 = vdwg.mxu0
      %v221 = vpack.c.bf16 %v218, %v218
      %vm222 = vcmask 60416
      %223 = vst.msk [vmem:[%s155] sm:$0xf] %vm222, %v221
      %224 = vrot.lane.b32.xlu0 %v161, 120
      %v225 = vpop.permute.xlu0 %224
      %226 = vrot.lane.b32.xlu0 %v161, 88
      %v227 = vpop.permute.xlu0 %226
      %v229 = vsel %vm164, %v225, 0
      %v232 = vsel %vm164, %v227, 0
      %234 = vmatpush.bf16.xpose.msra.mxu0 0
      %235 = vmatpush.bf16.xpose.msra.mxu0 0
      %236 = vmatpush.bf16.xpose.msra.mxu0 0
      %237 = vmatpush.bf16.xpose.msra.mxu0 0
      %238 = vmatpush.bf16.xpose.msra.mxu0 0
      %239 = vmatpush.bf16.xpose.msra.mxu0 0
      %240 = vmatpush.bf16.xpose.msra.mxu0 0
      %241 = vmatpush.bf16.xpose.msra.mxu0 %v232
      %242 = vmatmul.bf16.gmra.mxu0 %v229
      %v243 = vpop.f32.mrf.mxu0
      %v244 = vadd.f32 0.0, %v243
      %v245 = vpop.f32.mrf.mxu0
      %246 = vdwg.mxu0
      %v247 = vsel %vm185, -1e+09, %v244
      %v248 = vsel %vm164, %v247, -inf
      %249 = vmax.xlane.f32.xlu0 %v248
      %v250 = vpop.xlane.xlu0 %249
      %v251 = vsub.f32 %v247, %v250
      %v252 = vmul.f32 %v251, 1.442695
      %v253 = vpow.pop %v252
      %v254 = vsel %vm164, %v253, 0.0
      %255 = vadd.xlane.f32.xlu0 %v254
      %v256 = vpop.xlane.xlu0 %255
      %v257 = vrcp.pop %v256
      %v258 = vmul.f32 %v253, %v257
      %v259 = vpack.c.bf16 %v258, %v258
      %260 = vrot.lane.b32.xlu0 %v161, 56
      %v261 = vpop.permute.xlu0 %260
      %v263 = vsel %vm164, %v259, 0
      %v266 = vsel %vm204, %v261, 0
      %268 = vmatpush.bf16.msra.mxu0 0
      %269 = vmatpush.bf16.msra.mxu0 0
      %270 = vmatpush.bf16.msra.mxu0 0
      %271 = vmatpush.bf16.msra.mxu0 0
      %272 = vmatpush.bf16.msra.mxu0 0
      %273 = vmatpush.bf16.msra.mxu0 0
      %274 = vmatpush.bf16.msra.mxu0 0
      %275 = vmatpush.bf16.msra.mxu0 %v266
      %276 = vmatmul.bf16.gmra.mxu0 %v263
      %v277 = vpop.f32.mrf.mxu0
      %v278 = vadd.f32 0.0, %v277
      %v279 = vpop.f32.mrf.mxu0
      %280 = vdwg.mxu0
      %v281 = vpack.c.bf16 %v278, %v278
      %283 = vrot.lane.b32.xlu0 %v281, 8
      %v284 = vpop.permute.xlu0 %283
      %vm286 = vcmask 126016
      %287 = vst.msk [vmem:[%s155] sm:$0xf] %vm286, %v284
      %288 = vrot.lane.b32.xlu0 %v161, 112
      %v289 = vpop.permute.xlu0 %288
      %290 = vrot.lane.b32.xlu0 %v161, 80
      %v291 = vpop.permute.xlu0 %290
      %v293 = vsel %vm164, %v289, 0
      %v296 = vsel %vm164, %v291, 0
      %298 = vmatpush.bf16.xpose.msra.mxu0 0
      %299 = vmatpush.bf16.xpose.msra.mxu0 0
      %300 = vmatpush.bf16.xpose.msra.mxu0 0
      %301 = vmatpush.bf16.xpose.msra.mxu0 0
      %302 = vmatpush.bf16.xpose.msra.mxu0 0
      %303 = vmatpush.bf16.xpose.msra.mxu0 0
      %304 = vmatpush.bf16.xpose.msra.mxu0 0
      %305 = vmatpush.bf16.xpose.msra.mxu0 %v296
      %306 = vmatmul.bf16.gmra.mxu0 %v293
      %v307 = vpop.f32.mrf.mxu0
      %v308 = vadd.f32 0.0, %v307
      %v309 = vpop.f32.mrf.mxu0
      %310 = vdwg.mxu0
      %v311 = vsel %vm185, -1e+09, %v308
      %v312 = vsel %vm164, %v311, -inf
      %313 = vmax.xlane.f32.xlu0 %v312
      %v314 = vpop.xlane.xlu0 %313
      %v315 = vsub.f32 %v311, %v314
      %v316 = vmul.f32 %v315, 1.442695
      %v317 = vpow.pop %v316
      %v318 = vsel %vm164, %v317, 0.0
      %319 = vadd.xlane.f32.xlu0 %v318
      %v320 = vpop.xlane.xlu0 %319
      %v321 = vrcp.pop %v320
      %v322 = vmul.f32 %v317, %v321
      %v323 = vpack.c.bf16 %v322, %v322
      %324 = vrot.lane.b32.xlu0 %v161, 48
      %v325 = vpop.permute.xlu0 %324
      %v327 = vsel %vm164, %v323, 0
      %v330 = vsel %vm204, %v325, 0
      %332 = vmatpush.bf16.msra.mxu0 0
      %333 = vmatpush.bf16.msra.mxu0 0
      %334 = vmatpush.bf16.msra.mxu0 0
      %335 = vmatpush.bf16.msra.mxu0 0
      %336 = vmatpush.bf16.msra.mxu0 0
      %337 = vmatpush.bf16.msra.mxu0 0
      %338 = vmatpush.bf16.msra.mxu0 0
      %339 = vmatpush.bf16.msra.mxu0 %v330
      %340 = vmatmul.bf16.gmra.mxu0 %v327
      %v341 = vpop.f32.mrf.mxu0
      %v342 = vadd.f32 0.0, %v341
      %v343 = vpop.f32.mrf.mxu0
      %344 = vdwg.mxu0
      %v345 = vpack.c.bf16 %v342, %v342
      %347 = vrot.lane.b32.xlu0 %v345, 16
      %v348 = vpop.permute.xlu0 %347
      %vm350 = vcmask 191616
      %351 = vst.msk [vmem:[%s155] sm:$0xf] %vm350, %v348
      %352 = vrot.lane.b32.xlu0 %v161, 104
      %v353 = vpop.permute.xlu0 %352
      %354 = vrot.lane.b32.xlu0 %v161, 72
      %v355 = vpop.permute.xlu0 %354
      %v357 = vsel %vm164, %v353, 0
      %v360 = vsel %vm164, %v355, 0
      %362 = vmatpush.bf16.xpose.msra.mxu0 0
      %363 = vmatpush.bf16.xpose.msra.mxu0 0
      %364 = vmatpush.bf16.xpose.msra.mxu0 0
      %365 = vmatpush.bf16.xpose.msra.mxu0 0
      %366 = vmatpush.bf16.xpose.msra.mxu0 0
      %367 = vmatpush.bf16.xpose.msra.mxu0 0
      %368 = vmatpush.bf16.xpose.msra.mxu0 0
      %369 = vmatpush.bf16.xpose.msra.mxu0 %v360
      %370 = vmatmul.bf16.gmra.mxu0 %v357
      %v371 = vpop.f32.mrf.mxu0
      %v372 = vadd.f32 0.0, %v371
      %v373 = vpop.f32.mrf.mxu0
      %374 = vdwg.mxu0
      %v375 = vsel %vm185, -1e+09, %v372
      %v376 = vsel %vm164, %v375, -inf
      %377 = vmax.xlane.f32.xlu0 %v376
      %v378 = vpop.xlane.xlu0 %377
      %v379 = vsub.f32 %v375, %v378
      %v380 = vmul.f32 %v379, 1.442695
      %v381 = vpow.pop %v380
      %v382 = vsel %vm164, %v381, 0.0
      %383 = vadd.xlane.f32.xlu0 %v382
      %v384 = vpop.xlane.xlu0 %383
      %v385 = vrcp.pop %v384
      %v386 = vmul.f32 %v381, %v385
      %v387 = vpack.c.bf16 %v386, %v386
      %388 = vrot.lane.b32.xlu0 %v161, 40
      %v389 = vpop.permute.xlu0 %388
      %v391 = vsel %vm164, %v387, 0
      %v394 = vsel %vm204, %v389, 0
      %396 = vmatpush.bf16.msra.mxu0 0
      %397 = vmatpush.bf16.msra.mxu0 0
      %398 = vmatpush.bf16.msra.mxu0 0
      %399 = vmatpush.bf16.msra.mxu0 0
      %400 = vmatpush.bf16.msra.mxu0 0
      %401 = vmatpush.bf16.msra.mxu0 0
      %402 = vmatpush.bf16.msra.mxu0 0
      %403 = vmatpush.bf16.msra.mxu0 %v394
      %404 = vmatmul.bf16.gmra.mxu0 %v391
      %v405 = vpop.f32.mrf.mxu0
      %v406 = vadd.f32 0.0, %v405
      %v407 = vpop.f32.mrf.mxu0
      %408 = vdwg.mxu0
      %v409 = vpack.c.bf16 %v406, %v406
      %411 = vrot.lane.b32.xlu0 %v409, 24
      %v412 = vpop.permute.xlu0 %411
      %vm414 = vcmask 257216
      %415 = vst.msk [vmem:[%s155] sm:$0xf] %vm414, %v412
      %p416 = scmp.lt.s32.totalorder %s13, 1
      %s417 = scalar_select %p416, %s13, 1
      %s418 = smul.addr %s417, 4
      %s419 = scalar_lea.vmem %s2, %s418
      // Predicated region
      $region29: #{decoder_block_forward.9} parent=27 // pred_check
        %p420 = pneg %p83
      $region30: #{decoder_block_forward.9} parent=27 // pred_check_branch
        %422 = sbr.rel (%p420) target = $region32
      $region31: #{decoder_block_forward.9} parent=27 // pred_region
        _
      $region32: #{decoder_block_forward.9} parent=27 // pred_fallthru
        _
    $region28: #{decoder_block_forward.9} parent=5 // pred_fallthru
      _
    %p423 = scmp.le.s32.totalorder 2, %s8
    // Predicated region
    $region33: #{decoder_block_forward.9} parent=5 // pred_check
      %p424 = pneg %p423
    $region34: #{decoder_block_forward.9} parent=5 // pred_check_branch
      %426 = sbr.rel (%p424) target = $region36
    $region35: #{decoder_block_forward.9} parent=5 // pred_region
      %s427 = ssub.s32 %s8, 2
      // Predicated region
      $region37: #{decoder_block_forward.9} parent=35 // pred_check
        %p428 = pneg %p89
      $region38: #{decoder_block_forward.9} parent=35 // pred_check_branch
        %430 = sbr.rel (%p428) target = $region40
      $region39: #{decoder_block_forward.9} parent=35 // pred_region
        %p431 = scmp.lt.s32.totalorder %s14, 1
        %s432 = scalar_select %p431, %s14, 1
        %s433 = smul.addr %s432, 4
        %s434 = scalar_lea.vmem %s2, %s433
      $region40: #{decoder_block_forward.9} parent=35 // pred_fallthru
        _
    $region36: #{decoder_block_forward.9} parent=5 // pred_fallthru
      _
  $region6: #{decoder_block_forward.9} parent=0 // loop_footer
    %s12 = sadd.s32 1, %s8
  $region7: #{decoder_block_forward.9} parent=0 // loop_footer_branch
    %7 = sbr.rel target = $region3
  $region8: #{decoder_block_forward.9} parent=0 // loop_exit
    _

// kernel: decoder_block_forward.12
$region0: #{decoder_block_forward.12}
  #allocation0 [shape = 'u32[]', space=smem, size = 0x4, offset = 0x4, fixed_abs, tag = 'smem constant byte address 0x4 - core index']
  #allocation1 [shape = 'u32[72,128]{1,0:T(1,128)}', space=vmem, size = 0x9000, scoped, tag = 'internal scratch']
  #allocation2 [shape = 'f32[16,64]{1,0:T(8,128)}', space=vmem, size = 0x2000, scoped, tag = 'scratch operand']
  %s0 = inlined_call_operand.vmem [shape: f32[16,32], index: 0, kind: input, shape index: {}]
  %s1 = inlined_call_operand.vmem [shape: bf16[32,64], index: 1, kind: input, shape index: {}]
  %s2 = inlined_call_operand.vmem [shape: f32[1,64], index: 2, kind: input, shape index: {}]
  %s3 = inlined_call_operand.vmem [shape: bf16[16,64], index: 3, kind: output, shape index: {}]
  %s4 = sld [smem:[#allocation0]]
  $region30: #{decoder_block_forward.12} parent=0
    _
  %s6 = ssub.s32 1, %s4
  %s7 = scalar_select 0, %s6, %s4
  // Predicated region
  $region2: #{decoder_block_forward.12} parent=0 // pred_check
    _
  $region3: #{decoder_block_forward.12} parent=0 // pred_check_branch
    %9 = sbr.rel (0) target = $region5
  $region4: #{decoder_block_forward.12} parent=0 // pred_region
    _
  $region5: #{decoder_block_forward.12} parent=0 // pred_fallthru
    _
  // Predicated region
  $region6: #{decoder_block_forward.12} parent=0 // pred_check
    _
  $region7: #{decoder_block_forward.12} parent=0 // pred_check_branch
    %11 = sbr.rel (0) target = $region9
  $region8: #{decoder_block_forward.12} parent=0 // pred_region
    _
  $region9: #{decoder_block_forward.12} parent=0 // pred_fallthru
    _
  // Predicated region
  $region10: #{decoder_block_forward.12} parent=0 // pred_check
    _
  $region11: #{decoder_block_forward.12} parent=0 // pred_check_branch
    %13 = sbr.rel (0) target = $region13
  $region12: #{decoder_block_forward.12} parent=0 // pred_region
    _
  $region13: #{decoder_block_forward.12} parent=0 // pred_fallthru
    _
  %p15 = scmp.eq.s32.totalorder 0, 0
  // Predicated region
  $region14: #{decoder_block_forward.12} parent=0 // pred_check
    %p16 = pneg %p15
  $region15: #{decoder_block_forward.12} parent=0 // pred_check_branch
    %18 = sbr.rel (%p16) target = $region17
  $region16: #{decoder_block_forward.12} parent=0 // pred_region
    %vm19 = vcmask 523264
    %20 = vst.msk [vmem:[#allocation2] sm:$0xff] %vm19, 0.0
    %21 = vst.msk [vmem:[#allocation2 + $0x8] sm:$0xff] %vm19, 0.0
  $region17: #{decoder_block_forward.12} parent=0 // pred_fallthru
    _
  %v22 = vld [vmem:[#allocation2] sm:$0xff]
  %v23 = vld [vmem:[#allocation2 + $0x8] sm:$0xff]
  %v24 = vld [vmem:[%s0] sm:$0xff]
  %v25 = vld [vmem:[%s0 + $0x8] sm:$0xff]
  %v26 = vpack.c.bf16 %v25, %v24
  %v27 = vld [vmem:[%s1] sm:$0xf]
  %v28 = vld [vmem:[%s1 + $0x4] sm:$0xf]
  %v29 = vld [vmem:[%s1 + $0x8] sm:$0xf]
  %v30 = vld [vmem:[%s1 + $0xc] sm:$0xf]
  %v35 = vunpack.c.l.b16 %v27
  %v36 = vunpack.c.l.b16 %v28
  %v37 = vunpack.c.l.b16 %v29
  %v38 = vunpack.c.l.b16 %v30
  %v39 = vpack.c.b16 %v36, %v35
  %v40 = vpack.c.b16 %v38, %v37
  %vm43 = vcmask 261120
  %v45 = vsel %vm43, %v26, 0
  %47 = vmatpush.bf16.msra.mxu0 0
  %48 = vmatpush.bf16.msra.mxu0 0
  %49 = vmatpush.bf16.msra.mxu0 0
  %50 = vmatpush.bf16.msra.mxu0 0
  %51 = vmatpush.bf16.msra.mxu0 0
  %52 = vmatpush.bf16.msra.mxu0 0
  %53 = vmatpush.bf16.msra.mxu0 %v40
  %54 = vmatpush.bf16.msra.mxu0 %v39
  %55 = vmatmul.bf16.gmra.mxu0 %v45
  %v56 = vpop.f32.mrf.mxu0
  %v57 = vadd.f32 0.0, %v56
  %v58 = vpop.f32.mrf.mxu0
  %v59 = vadd.f32 0.0, %v58
  %60 = vdwg.mxu0
  %v61 = vadd.f32 %v22, %v57
  %v62 = vadd.f32 %v23, %v59
  %vm63 = vcmask 523264
  %64 = vst.msk [vmem:[#allocation2] sm:$0xff] %vm63, %v61
  %65 = vst.msk [vmem:[#allocation2 + $0x8] sm:$0xff] %vm63, %v62
  // Predicated region
  $region18: #{decoder_block_forward.12} parent=0 // pred_check
    %p66 = pneg %p15
  $region19: #{decoder_block_forward.12} parent=0 // pred_check_branch
    %68 = sbr.rel (%p66) target = $region21
  $region20: #{decoder_block_forward.12} parent=0 // pred_region
    %v69 = vld [vmem:[#allocation2] sm:$0xff]
    %v70 = vld [vmem:[#allocation2 + $0x8] sm:$0xff]
    %v71 = vld [vmem:[%s2] sm:$0x1]
    %v73 = vperm.slane %v71, 0
    %v75 = vadd.f32 %v69, %v73
    %v76 = vadd.f32 %v70, %v73
    %v77 = vpack.c.bf16 %v75, %v75
    %v78 = vpack.c.bf16 %v76, %v76
    %vm79 = vcmask 519168
    %80 = vst.msk [vmem:[%s3] sm:$0xf] %vm79, %v77
    %81 = vst.msk [vmem:[%s3 + $0x4] sm:$0xf] %vm79, %v78
  $region21: #{decoder_block_forward.12} parent=0 // pred_fallthru
    _
  // Predicated region
  $region22: #{decoder_block_forward.12} parent=0 // pred_check
    _
  $region23: #{decoder_block_forward.12} parent=0 // pred_check_branch
    %83 = sbr.rel (0) target = $region25
  $region24: #{decoder_block_forward.12} parent=0 // pred_region
    _
  $region25: #{decoder_block_forward.12} parent=0 // pred_fallthru
    _
  // Predicated region
  $region26: #{decoder_block_forward.12} parent=0 // pred_check
    _
  $region27: #{decoder_block_forward.12} parent=0 // pred_check_branch
    %85 = sbr.rel (0) target = $region29
  $region28: #{decoder_block_forward.12} parent=0 // pred_region
    _
  $region29: #{decoder_block_forward.12} parent=0 // pred_fallthru
    _

// kernel: decoder_block_forward.13
$region0: #{decoder_block_forward.13}
  #allocation0 [shape = 'u32[]', space=smem, size = 0x4, offset = 0x4, fixed_abs, tag = 'smem constant byte address 0x4 - core index']
  #allocation1 [shape = 'u32[72,128]{1,0:T(1,128)}', space=vmem, size = 0x9000, scoped, tag = 'internal scratch']
  %s0 = inlined_call_operand.vmem [shape: bf16[2,8,32], index: 0, kind: input, shape index: {}]
  %s1 = inlined_call_operand.vmem [shape: bf16[2,8,64], index: 1, kind: input, shape index: {}]
  %s2 = inlined_call_operand.vmem [shape: bf16[2,8,8], index: 2, kind: input, shape index: {}]
  %s3 = inlined_call_operand.vmem [shape: bf16[2,8,32], index: 3, kind: output, shape index: {}]
  %s4 = sld [smem:[#allocation0]]
  $region45: #{decoder_block_forward.13} parent=0
    _
  %s6 = ssub.s32 1, %s4
  %s7 = scalar_select 0, %s6, %s4
  loop: start=0, step=1, limit=4
  $region2: #{decoder_block_forward.13} parent=0 // loop_pre_header
    _
  $region3: #{decoder_block_forward.13} parent=0 // loop_header
    %s9 = sphi 0, %s13
    %p10 = scmp.ge.s32.totalorder %s9, 4
    %s19 = sphi 0, %s21
    %s22 = sphi 0, %s19
    %s23 = sphi 0, %s22
    %s39 = sphi 0, %s23
    %s45 = sphi 0, %s47
    %s48 = sphi 0, %s45
    %s49 = sphi 0, %s48
    %s65 = sphi 0, %s49
    %s71 = sphi 0, %s73
    %s74 = sphi 0, %s71
    %s75 = sphi 0, %s74
    %s91 = sphi 0, %s75
    %s97 = sphi 0, %s99
    %s100 = sphi 0, %s97
    %s101 = sphi 0, %s100
    %s117 = sphi 0, %s101
  $region4: #{decoder_block_forward.13} parent=0 // loop_header_branch
    %12 = sbr.rel (%p10) target = $region8
  $region5: #{decoder_block_forward.13} parent=0 // loop_body
    %s14 = ssub.s32 %s9, 1
    %s15 = ssub.s32 %s9, 2
    %s16 = sadd.s32 %s9, 1
    %s17 = ssub.s32 %s9, %s16
    %p18 = scmp.eq.s32.totalorder %s17, 0
    %s20 = sadd.s32 %s19, 1
    %s21 = scalar_select %p18, %s19, %s20
    %p24 = pneg %p18
    %p25 = scmp.eq.s32.totalorder %s9, 1
    %p26 = por %p24, %p25
    %p27 = scmp.ne.s32.totalorder %s19, %s22
    %p28 = scmp.eq.s32.totalorder %s9, 0
    %p29 = por %p27, %p28
    %p30 = scmp.ne.s32.totalorder %s19, %s22
    %p31 = scmp.eq.s32.totalorder %s14, 1
    %p32 = por %p30, %p31
    %p33 = scmp.ne.s32.totalorder %s22, %s23
    %p34 = scmp.eq.s32.totalorder %s14, 0
    %p35 = por %p33, %p34
    %p36 = scmp.ne.s32.totalorder %s22, %s23
    %p37 = scmp.eq.s32.totalorder %s15, 1
    %p38 = por %p36, %p37
    %p40 = scmp.ne.s32.totalorder %s23, %s39
    %p41 = scmp.eq.s32.totalorder %s15, 0
    %p42 = por %p40, %p41
    %s43 = ssub.s32 %s9, %s16
    %p44 = scmp.eq.s32.totalorder %s43, 0
    %s46 = sadd.s32 %s45, 1
    %s47 = scalar_select %p44, %s45, %s46
    %p50 = pneg %p44
    %p51 = scmp.eq.s32.totalorder %s9, 1
    %p52 = por %p50, %p51
    %p53 = scmp.ne.s32.totalorder %s45, %s48
    %p54 = scmp.eq.s32.totalorder %s9, 0
    %p55 = por %p53, %p54
    %p56 = scmp.ne.s32.totalorder %s45, %s48
    %p57 = scmp.eq.s32.totalorder %s14, 1
    %p58 = por %p56, %p57
    %p59 = scmp.ne.s32.totalorder %s48, %s49
    %p60 = scmp.eq.s32.totalorder %s14, 0
    %p61 = por %p59, %p60
    %p62 = scmp.ne.s32.totalorder %s48, %s49
    %p63 = scmp.eq.s32.totalorder %s15, 1
    %p64 = por %p62, %p63
    %p66 = scmp.ne.s32.totalorder %s49, %s65
    %p67 = scmp.eq.s32.totalorder %s15, 0
    %p68 = por %p66, %p67
    %s69 = ssub.s32 %s9, %s16
    %p70 = scmp.eq.s32.totalorder %s69, 0
    %s72 = sadd.s32 %s71, 1
    %s73 = scalar_select %p70, %s71, %s72
    %p76 = pneg %p70
    %p77 = scmp.eq.s32.totalorder %s9, 1
    %p78 = por %p76, %p77
    %p79 = scmp.ne.s32.totalorder %s71, %s74
    %p80 = scmp.eq.s32.totalorder %s9, 0
    %p81 = por %p79, %p80
    %p82 = scmp.ne.s32.totalorder %s71, %s74
    %p83 = scmp.eq.s32.totalorder %s14, 1
    %p84 = por %p82, %p83
    %p85 = scmp.ne.s32.totalorder %s74, %s75
    %p86 = scmp.eq.s32.totalorder %s14, 0
    %p87 = por %p85, %p86
    %p88 = scmp.ne.s32.totalorder %s74, %s75
    %p89 = scmp.eq.s32.totalorder %s15, 1
    %p90 = por %p88, %p89
    %p92 = scmp.ne.s32.totalorder %s75, %s91
    %p93 = scmp.eq.s32.totalorder %s15, 0
    %p94 = por %p92, %p93
    %s95 = ssub.s32 %s9, %s16
    %p96 = scmp.eq.s32.totalorder %s95, 0
    %s98 = sadd.s32 %s97, 1
    %s99 = scalar_select %p96, %s97, %s98
    %p102 = pneg %p96
    %p103 = scmp.eq.s32.totalorder %s9, 1
    %p104 = por %p102, %p103
    %p105 = scmp.ne.s32.totalorder %s97, %s100
    %p106 = scmp.eq.s32.totalorder %s9, 0
    %p107 = por %p105, %p106
    %p108 = scmp.ne.s32.totalorder %s97, %s100
    %p109 = scmp.eq.s32.totalorder %s14, 1
    %p110 = por %p108, %p109
    %p111 = scmp.ne.s32.totalorder %s100, %s101
    %p112 = scmp.eq.s32.totalorder %s14, 0
    %p113 = por %p111, %p112
    %p114 = scmp.ne.s32.totalorder %s100, %s101
    %p115 = scmp.eq.s32.totalorder %s15, 1
    %p116 = por %p114, %p115
    %p118 = scmp.ne.s32.totalorder %s101, %s117
    %p119 = scmp.eq.s32.totalorder %s15, 0
    %p120 = por %p118, %p119
    %p121 = scmp.le.s32.totalorder 1, %s9
    %p122 = scmp.lt.s32.totalorder %s9, 3
    %p123 = pnand %p121, %p122
    %p124 = pneg %p123
    // Predicated region
    $region9: #{decoder_block_forward.13} parent=5 // pred_check
      _
    $region10: #{decoder_block_forward.13} parent=5 // pred_check_branch
      %126 = sbr.rel (%p123) target = $region12
    $region11: #{decoder_block_forward.13} parent=5 // pred_region
      %s127 = ssub.s32 %s9, 1
    $region12: #{decoder_block_forward.13} parent=5 // pred_fallthru
      _
    %p128 = scmp.lt.s32.totalorder %s9, 2
    // Predicated region
    $region13: #{decoder_block_forward.13} parent=5 // pred_check
      %p129 = pneg %p128
    $region14: #{decoder_block_forward.13} parent=5 // pred_check_branch
      %131 = sbr.rel (%p129) target = $region16
    $region15: #{decoder_block_forward.13} parent=5 // pred_region
      // Predicated region
      $region17: #{decoder_block_forward.13} parent=15 // pred_check
        %p132 = pneg %p29
      $region18: #{decoder_block_forward.13} parent=15 // pred_check_branch
        %134 = sbr.rel (%p132) target = $region20
      $region19: #{decoder_block_forward.13} parent=15 // pred_region
        %p135 = scmp.lt.s32.totalorder %s9, 1
        %s136 = scalar_select %p135, %s9, 1
        %s137 = smul.addr %s136, 4
        %s138 = scalar_lea.vmem %s0, %s137
      $region20: #{decoder_block_forward.13} parent=15 // pred_fallthru
        _
      // Predicated region
      $region21: #{decoder_block_forward.13} parent=15 // pred_check
        %p139 = pneg %p55
      $region22: #{decoder_block_forward.13} parent=15 // pred_check_branch
        %141 = sbr.rel (%p139) target = $region24
      $region23: #{decoder_block_forward.13} parent=15 // pred_region
        %p142 = scmp.lt.s32.totalorder %s9, 1
        %s143 = scalar_select %p142, %s9, 1
        %s144 = smul.addr %s143, 4
        %s145 = scalar_lea.vmem %s1, %s144
      $region24: #{decoder_block_forward.13} parent=15 // pred_fallthru
        _
      // Predicated region
      $region25: #{decoder_block_forward.13} parent=15 // pred_check
        %p146 = pneg %p81
      $region26: #{decoder_block_forward.13} parent=15 // pred_check_branch
        %148 = sbr.rel (%p146) target = $region28
      $region27: #{decoder_block_forward.13} parent=15 // pred_region
        %p149 = scmp.lt.s32.totalorder %s9, 1
        %s150 = scalar_select %p149, %s9, 1
        %s151 = smul.addr %s150, 4
        %s152 = scalar_lea.vmem %s2, %s151
      $region28: #{decoder_block_forward.13} parent=15 // pred_fallthru
        _
    $region16: #{decoder_block_forward.13} parent=5 // pred_fallthru
      _
    %p153 = scmp.le.s32.totalorder 1, %s9
    %p154 = scmp.lt.s32.totalorder %s9, 3
    %p155 = pnand %p153, %p154
    %p156 = pneg %p155
    // Predicated region
    $region29: #{decoder_block_forward.13} parent=5 // pred_check
      _
    $region30: #{decoder_block_forward.13} parent=5 // pred_check_branch
      %158 = sbr.rel (%p155) target = $region32
    $region31: #{decoder_block_forward.13} parent=5 // pred_region
      %s159 = ssub.s32 %s9, 1
      %p160 = scmp.lt.s32.totalorder %s14, 1
      %s161 = scalar_select %p160, %s14, 1
      %s162 = smul.addr %s161, 4
      %s163 = scalar_lea.vmem %s0, %s162
      %p164 = pneg %p35
      %p165 = pneg %p32
      %p166 = scmp.lt.s32.totalorder %s14, 1
      %s167 = scalar_select %p166, %s14, 1
      %s168 = smul.addr %s167, 4
      %s169 = scalar_lea.vmem %s1, %s168
      %p170 = pneg %p61
      %p171 = pneg %p58
      %p172 = scmp.lt.s32.totalorder %s14, 1
      %s173 = scalar_select %p172, %s14, 1
      %s174 = smul.addr %s173, 4
      %s175 = scalar_lea.vmem %s2, %s174
      %p176 = pneg %p87
      %p177 = pneg %p84
      %p178 = pneg %p113
      %p179 = pneg %p110
      %p180 = scmp.lt.s32.totalorder %s14, 1
      %s181 = scalar_select %p180, %s14, 1
      %s182 = smul.addr %s181, 4
      %s183 = scalar_lea.vmem %s3, %s182
      %p184 = scmp.lt.s32.totalorder %s14, 1
      %s185 = scalar_select %p184, %s14, 1
      %s186 = smul.addr %s185, 4
      %s187 = scalar_lea.vmem %s0, %s186
      %p188 = scmp.lt.s32.totalorder %s14, 1
      %s189 = scalar_select %p188, %s14, 1
      %s190 = smul.addr %s189, 4
      %s191 = scalar_lea.vmem %s1, %s190
      %p192 = scmp.lt.s32.totalorder %s14, 1
      %s193 = scalar_select %p192, %s14, 1
      %s194 = smul.addr %s193, 4
      %s195 = scalar_lea.vmem %s2, %s194
      %p196 = scmp.lt.s32.totalorder %s14, 1
      %s197 = scalar_select %p196, %s14, 1
      %s198 = smul.addr %s197, 4
      %s199 = scalar_lea.vmem %s3, %s198
      %v201 = vld [vmem:[%s187] sm:$0xf]
      %v202 = vld [vmem:[%s191] sm:$0xf]
      %v203 = vld [vmem:[%s195] sm:$0xf]
      %vm204 = vcmask 64512
      %v206 = vsel %vm204, %v201, 0
      %v209 = vsel %vm204, %v202, 0
      %211 = vmatpush.bf16.xpose.msra.mxu0 0
      %212 = vmatpush.bf16.xpose.msra.mxu0 0
      %213 = vmatpush.bf16.xpose.msra.mxu0 0
      %214 = vmatpush.bf16.xpose.msra.mxu0 0
      %215 = vmatpush.bf16.xpose.msra.mxu0 0
      %216 = vmatpush.bf16.xpose.msra.mxu0 0
      %217 = vmatpush.bf16.xpose.msra.mxu0 0
      %218 = vmatpush.bf16.xpose.msra.mxu0 %v209
      %219 = vmatmul.bf16.gmra.mxu0 %v206
      %v220 = vpop.f32.mrf.mxu0
      %v221 = vadd.f32 0.0, %v220
      %v222 = vpop.f32.mrf.mxu0
      %223 = vdwg.mxu0
      %v224 = vunpack.c.l.bf16 %v203
      %vm225 = vcmp.eq.f32.partialorder %v224, 0.0
      %v226 = vsel %vm225, -1e+09, %v221
      %v227 = vsel %vm204, %v226, -inf
      %228 = vmax.xlane.f32.xlu0 %v227
      %v229 = vpop.xlane.xlu0 %228
      %v230 = vsub.f32 %v226, %v229
      %v231 = vmul.f32 %v230, 1.442695
      %v232 = vpow.pop %v231
      %v233 = vsel %vm204, %v232, 0.0
      %234 = vadd.xlane.f32.xlu0 %v233
      %v235 = vpop.xlane.xlu0 %234
      %v236 = vrcp.pop %v235
      %v237 = vmul.f32 %v232, %v236
      %v238 = vpack.c.bf16 %v237, %v237
      %v240 = vunpack.c.l.b16 %v202
      %v241 = vpack.c.b16 %v240, %v240
      %242 = vrot.lane.b32.xlu0 %v241, 96
      %v243 = vpop.permute.xlu0 %242
      %v245 = vsel %vm204, %v238, 0
      %vm247 = vcmask 1043456
      %v249 = vsel %vm247, %v243, 0
      %251 = vmatpush.bf16.msra.mxu0 0
      %252 = vmatpush.bf16.msra.mxu0 0
      %253 = vmatpush.bf16.msra.mxu0 0
      %254 = vmatpush.bf16.msra.mxu0 0
      %255 = vmatpush.bf16.msra.mxu0 0
      %256 = vmatpush.bf16.msra.mxu0 0
      %257 = vmatpush.bf16.msra.mxu0 0
      %258 = vmatpush.bf16.msra.mxu0 %v249
      %259 = vmatmul.bf16.gmra.mxu0 %v245
      %v260 = vpop.f32.mrf.mxu0
      %v261 = vadd.f32 0.0, %v260
      %v262 = vpop.f32.mrf.mxu0
      %263 = vdwg.mxu0
      %v264 = vpack.c.bf16 %v261, %v261
      %vm265 = vcmask 60416
      %266 = vst.msk [vmem:[%s199] sm:$0xf] %vm265, %v264
      %v268 = vunpack.c.l.b16 %v201
      %v269 = vpack.c.b16 %v268, %v268
      %270 = vrot.lane.b32.xlu0 %v269, 120
      %v271 = vpop.permute.xlu0 %270
      %272 = vrot.lane.b32.xlu0 %v241, 120
      %v273 = vpop.permute.xlu0 %272
      %v275 = vsel %vm204, %v271, 0
      %v278 = vsel %vm204, %v273, 0
      %280 = vmatpush.bf16.xpose.msra.mxu0 0
      %281 = vmatpush.bf16.xpose.msra.mxu0 0
      %282 = vmatpush.bf16.xpose.msra.mxu0 0
      %283 = vmatpush.bf16.xpose.msra.mxu0 0
      %284 = vmatpush.bf16.xpose.msra.mxu0 0
      %285 = vmatpush.bf16.xpose.msra.mxu0 0
      %286 = vmatpush.bf16.xpose.msra.mxu0 0
      %287 = vmatpush.bf16.xpose.msra.mxu0 %v278
      %288 = vmatmul.bf16.gmra.mxu0 %v275
      %v289 = vpop.f32.mrf.mxu0
      %v290 = vadd.f32 0.0, %v289
      %v291 = vpop.f32.mrf.mxu0
      %292 = vdwg.mxu0
      %v293 = vsel %vm225, -1e+09, %v290
      %v294 = vsel %vm204, %v293, -inf
      %295 = vmax.xlane.f32.xlu0 %v294
      %v296 = vpop.xlane.xlu0 %295
      %v297 = vsub.f32 %v293, %v296
      %v298 = vmul.f32 %v297, 1.442695
      %v299 = vpow.pop %v298
      %v300 = vsel %vm204, %v299, 0.0
      %301 = vadd.xlane.f32.xlu0 %v300
      %v302 = vpop.xlane.xlu0 %301
      %v303 = vrcp.pop %v302
      %v304 = vmul.f32 %v299, %v303
      %v305 = vpack.c.bf16 %v304, %v304
      %306 = vrot.lane.b32.xlu0 %v241, 88
      %v307 = vpop.permute.xlu0 %306
      %v309 = vsel %vm204, %v305, 0
      %v312 = vsel %vm247, %v307, 0
      %314 = vmatpush.bf16.msra.mxu0 0
      %315 = vmatpush.bf16.msra.mxu0 0
      %316 = vmatpush.bf16.msra.mxu0 0
      %317 = vmatpush.bf16.msra.mxu0 0
      %318 = vmatpush.bf16.msra.mxu0 0
      %319 = vmatpush.bf16.msra.mxu0 0
      %320 = vmatpush.bf16.msra.mxu0 0
      %321 = vmatpush.bf16.msra.mxu0 %v312
      %322 = vmatmul.bf16.gmra.mxu0 %v309
      %v323 = vpop.f32.mrf.mxu0
      %v324 = vadd.f32 0.0, %v323
      %v325 = vpop.f32.mrf.mxu0
      %326 = vdwg.mxu0
      %v327 = vpack.c.bf16 %v324, %v324
      %329 = vrot.lane.b32.xlu0 %v327, 8
      %v330 = vpop.permute.xlu0 %329
      %vm332 = vcmask 126016
      %333 = vst.msk [vmem:[%s199] sm:$0xf] %vm332, %v330
      %334 = vrot.lane.b32.xlu0 %v269, 112
      %v335 = vpop.permute.xlu0 %334
      %336 = vrot.lane.b32.xlu0 %v241, 112
      %v337 = vpop.permute.xlu0 %336
      %v339 = vsel %vm204, %v335, 0
      %v342 = vsel %vm204, %v337, 0
      %344 = vmatpush.bf16.xpose.msra.mxu0 0
      %345 = vmatpush.bf16.xpose.msra.mxu0 0
      %346 = vmatpush.bf16.xpose.msra.mxu0 0
      %347 = vmatpush.bf16.xpose.msra.mxu0 0
      %348 = vmatpush.bf16.xpose.msra.mxu0 0
      %349 = vmatpush.bf16.xpose.msra.mxu0 0
      %350 = vmatpush.bf16.xpose.msra.mxu0 0
      %351 = vmatpush.bf16.xpose.msra.mxu0 %v342
      %352 = vmatmul.bf16.gmra.mxu0 %v339
      %v353 = vpop.f32.mrf.mxu0
      %v354 = vadd.f32 0.0, %v353
      %v355 = vpop.f32.mrf.mxu0
      %356 = vdwg.mxu0
      %v357 = vsel %vm225, -1e+09, %v354
      %v358 = vsel %vm204, %v357, -inf
      %359 = vmax.xlane.f32.xlu0 %v358
      %v360 = vpop.xlane.xlu0 %359
      %v361 = vsub.f32 %v357, %v360
      %v362 = vmul.f32 %v361, 1.442695
      %v363 = vpow.pop %v362
      %v364 = vsel %vm204, %v363, 0.0
      %365 = vadd.xlane.f32.xlu0 %v364
      %v366 = vpop.xlane.xlu0 %365
      %v367 = vrcp.pop %v366
      %v368 = vmul.f32 %v363, %v367
      %v369 = vpack.c.bf16 %v368, %v368
      %370 = vrot.lane.b32.xlu0 %v241, 80
      %v371 = vpop.permute.xlu0 %370
      %v373 = vsel %vm204, %v369, 0
      %v376 = vsel %vm247, %v371, 0
      %378 = vmatpush.bf16.msra.mxu0 0
      %379 = vmatpush.bf16.msra.mxu0 0
      %380 = vmatpush.bf16.msra.mxu0 0
      %381 = vmatpush.bf16.msra.mxu0 0
      %382 = vmatpush.bf16.msra.mxu0 0
      %383 = vmatpush.bf16.msra.mxu0 0
      %384 = vmatpush.bf16.msra.mxu0 0
      %385 = vmatpush.bf16.msra.mxu0 %v376
      %386 = vmatmul.bf16.gmra.mxu0 %v373
      %v387 = vpop.f32.mrf.mxu0
      %v388 = vadd.f32 0.0, %v387
      %v389 = vpop.f32.mrf.mxu0
      %390 = vdwg.mxu0
      %v391 = vpack.c.bf16 %v388, %v388
      %393 = vrot.lane.b32.xlu0 %v391, 16
      %v394 = vpop.permute.xlu0 %393
      %vm396 = vcmask 191616
      %397 = vst.msk [vmem:[%s199] sm:$0xf] %vm396, %v394
      %398 = vrot.lane.b32.xlu0 %v269, 104
      %v399 = vpop.permute.xlu0 %398
      %400 = vrot.lane.b32.xlu0 %v241, 104
      %v401 = vpop.permute.xlu0 %400
      %v403 = vsel %vm204, %v399, 0
      %v406 = vsel %vm204, %v401, 0
      %408 = vmatpush.bf16.xpose.msra.mxu0 0
      %409 = vmatpush.bf16.xpose.msra.mxu0 0
      %410 = vmatpush.bf16.xpose.msra.mxu0 0
      %411 = vmatpush.bf16.xpose.msra.mxu0 0
      %412 = vmatpush.bf16.xpose.msra.mxu0 0
      %413 = vmatpush.bf16.xpose.msra.mxu0 0
      %414 = vmatpush.bf16.xpose.msra.mxu0 0
      %415 = vmatpush.bf16.xpose.msra.mxu0 %v406
      %416 = vmatmul.bf16.gmra.mxu0 %v403
      %v417 = vpop.f32.mrf.mxu0
      %v418 = vadd.f32 0.0, %v417
      %v419 = vpop.f32.mrf.mxu0
      %420 = vdwg.mxu0
      %v421 = vsel %vm225, -1e+09, %v418
      %v422 = vsel %vm204, %v421, -inf
      %423 = vmax.xlane.f32.xlu0 %v422
      %v424 = vpop.xlane.xlu0 %423
      %v425 = vsub.f32 %v421, %v424
      %v426 = vmul.f32 %v425, 1.442695
      %v427 = vpow.pop %v426
      %v428 = vsel %vm204, %v427, 0.0
      %429 = vadd.xlane.f32.xlu0 %v428
      %v430 = vpop.xlane.xlu0 %429
      %v431 = vrcp.pop %v430
      %v432 = vmul.f32 %v427, %v431
      %v433 = vpack.c.bf16 %v432, %v432
      %434 = vrot.lane.b32.xlu0 %v241, 72
      %v435 = vpop.permute.xlu0 %434
      %v437 = vsel %vm204, %v433, 0
      %v440 = vsel %vm247, %v435, 0
      %442 = vmatpush.bf16.msra.mxu0 0
      %443 = vmatpush.bf16.msra.mxu0 0
      %444 = vmatpush.bf16.msra.mxu0 0
      %445 = vmatpush.bf16.msra.mxu0 0
      %446 = vmatpush.bf16.msra.mxu0 0
      %447 = vmatpush.bf16.msra.mxu0 0
      %448 = vmatpush.bf16.msra.mxu0 0
      %449 = vmatpush.bf16.msra.mxu0 %v440
      %450 = vmatmul.bf16.gmra.mxu0 %v437
      %v451 = vpop.f32.mrf.mxu0
      %v452 = vadd.f32 0.0, %v451
      %v453 = vpop.f32.mrf.mxu0
      %454 = vdwg.mxu0
      %v455 = vpack.c.bf16 %v452, %v452
      %457 = vrot.lane.b32.xlu0 %v455, 24
      %v458 = vpop.permute.xlu0 %457
      %vm460 = vcmask 257216
      %461 = vst.msk [vmem:[%s199] sm:$0xf] %vm460, %v458
      %p462 = scmp.lt.s32.totalorder %s14, 1
      %s463 = scalar_select %p462, %s14, 1
      %s464 = smul.addr %s463, 4
      %s465 = scalar_lea.vmem %s3, %s464
      // Predicated region
      $region33: #{decoder_block_forward.13} parent=31 // pred_check
        %p466 = pneg %p110
      $region34: #{decoder_block_forward.13} parent=31 // pred_check_branch
        %468 = sbr.rel (%p466) target = $region36
      $region35: #{decoder_block_forward.13} parent=31 // pred_region
        _
      $region36: #{decoder_block_forward.13} parent=31 // pred_fallthru
        _
    $region32: #{decoder_block_forward.13} parent=5 // pred_fallthru
      _
    %p469 = scmp.le.s32.totalorder 2, %s9
    // Predicated region
    $region37: #{decoder_block_forward.13} parent=5 // pred_check
      %p470 = pneg %p469
    $region38: #{decoder_block_forward.13} parent=5 // pred_check_branch
      %472 = sbr.rel (%p470) target = $region40
    $region39: #{decoder_block_forward.13} parent=5 // pred_region
      %s473 = ssub.s32 %s9, 2
      // Predicated region
      $region41: #{decoder_block_forward.13} parent=39 // pred_check
        %p474 = pneg %p116
      $region42: #{decoder_block_forward.13} parent=39 // pred_check_branch
        %476 = sbr.rel (%p474) target = $region44
      $region43: #{decoder_block_forward.13} parent=39 // pred_region
        %p477 = scmp.lt.s32.totalorder %s15, 1
        %s478 = scalar_select %p477, %s15, 1
        %s479 = smul.addr %s478, 4
        %s480 = scalar_lea.vmem %s3, %s479
      $region44: #{decoder_block_forward.13} parent=39 // pred_fallthru
        _
    $region40: #{decoder_block_forward.13} parent=5 // pred_fallthru
      _
  $region6: #{decoder_block_forward.13} parent=0 // loop_footer
    %s13 = sadd.s32 1, %s9
  $region7: #{decoder_block_forward.13} parent=0 // loop_footer_branch
    %8 = sbr.rel target = $region3
  $region8: #{decoder_block_forward.13} parent=0 // loop_exit
    _

// kernel: decoder_block_forward.15
$region0: #{decoder_block_forward.15}
  #allocation0 [shape = 'u32[]', space=smem, size = 0x4, offset = 0x4, fixed_abs, tag = 'smem constant byte address 0x4 - core index']
  #allocation1 [shape = 'u32[72,128]{1,0:T(1,128)}', space=vmem, size = 0x9000, scoped, tag = 'internal scratch']
  #allocation2 [shape = 'f32[16,32]{1,0:T(8,128)}', space=vmem, size = 0x2000, scoped, tag = 'scratch operand']
  %s0 = inlined_call_operand.vmem [shape: f32[16,32], index: 0, kind: input, shape index: {}]
  %s1 = inlined_call_operand.vmem [shape: bf16[32,64], index: 1, kind: input, shape index: {}]
  %s2 = inlined_call_operand.vmem [shape: f32[1,64], index: 2, kind: input, shape index: {}]
  %s3 = inlined_call_operand.vmem [shape: bf16[64,32], index: 3, kind: input, shape index: {}]
  %s4 = inlined_call_operand.vmem [shape: f32[1,32], index: 4, kind: input, shape index: {}]
  %s5 = inlined_call_operand.vmem [shape: f32[1,32], index: 5, kind: input, shape index: {}]
  %s6 = inlined_call_operand.vmem [shape: f32[1,32], index: 6, kind: input, shape index: {}]
  %s7 = inlined_call_operand.hbm [shape: f32[16,32], index: 7, kind: output, shape index: {}]
  %s8 = sld [smem:[#allocation0]]
  $region46: #{decoder_block_forward.15} parent=0
    _
  %s10 = ssub.s32 1, %s8
  %s11 = scalar_select 0, %s10, %s8
  $region1: #{decoder_block_forward.15} parent=0
    #allocation3 [shape = 'u8[8192]{0}', space=vmem, size = 0x2000, scoped, tag = 'output window, operand 0, single buffered']
    #allocation4 [shape = 's32[1]{0}', space=sflag, size = 0x4, scoped, tag = 'scoped memory for decoder_block_forward.15']
    %12 = vsyncpa [#allocation4], 0
    // Predicated region
    $region2: #{decoder_block_forward.15} parent=1 // pred_check
      _
    $region3: #{decoder_block_forward.15} parent=1 // pred_check_branch
      %14 = sbr.rel (0) target = $region5
    $region4: #{decoder_block_forward.15} parent=1 // pred_region
      _
    $region5: #{decoder_block_forward.15} parent=1 // pred_fallthru
      _
    // Predicated region
    $region6: #{decoder_block_forward.15} parent=1 // pred_check
      _
    $region7: #{decoder_block_forward.15} parent=1 // pred_check_branch
      %16 = sbr.rel (0) target = $region9
    $region8: #{decoder_block_forward.15} parent=1 // pred_region
      _
    $region9: #{decoder_block_forward.15} parent=1 // pred_fallthru
      _
    // Predicated region
    $region10: #{decoder_block_forward.15} parent=1 // pred_check
      _
    $region11: #{decoder_block_forward.15} parent=1 // pred_check_branch
      %18 = sbr.rel (0) target = $region13
    $region12: #{decoder_block_forward.15} parent=1 // pred_region
      _
    $region13: #{decoder_block_forward.15} parent=1 // pred_fallthru
      _
    // Predicated region
    $region14: #{decoder_block_forward.15} parent=1 // pred_check
      _
    $region15: #{decoder_block_forward.15} parent=1 // pred_check_branch
      %20 = sbr.rel (0) target = $region17
    $region16: #{decoder_block_forward.15} parent=1 // pred_region
      _
    $region17: #{decoder_block_forward.15} parent=1 // pred_fallthru
      _
    // Predicated region
    $region18: #{decoder_block_forward.15} parent=1 // pred_check
      _
    $region19: #{decoder_block_forward.15} parent=1 // pred_check_branch
      %22 = sbr.rel (0) target = $region21
    $region20: #{decoder_block_forward.15} parent=1 // pred_region
      _
    $region21: #{decoder_block_forward.15} parent=1 // pred_fallthru
      _
    // Predicated region
    $region22: #{decoder_block_forward.15} parent=1 // pred_check
      _
    $region23: #{decoder_block_forward.15} parent=1 // pred_check_branch
      %24 = sbr.rel (0) target = $region25
    $region24: #{decoder_block_forward.15} parent=1 // pred_region
      _
    $region25: #{decoder_block_forward.15} parent=1 // pred_fallthru
      _
    // Predicated region
    $region26: #{decoder_block_forward.15} parent=1 // pred_check
      _
    $region27: #{decoder_block_forward.15} parent=1 // pred_check_branch
      %26 = sbr.rel (0) target = $region29
    $region28: #{decoder_block_forward.15} parent=1 // pred_region
      _
    $region29: #{decoder_block_forward.15} parent=1 // pred_fallthru
      _
    %p28 = scmp.eq.s32.totalorder 0, 0
    // Predicated region
    $region30: #{decoder_block_forward.15} parent=1 // pred_check
      %p29 = pneg %p28
    $region31: #{decoder_block_forward.15} parent=1 // pred_check_branch
      %31 = sbr.rel (%p29) target = $region33
    $region32: #{decoder_block_forward.15} parent=1 // pred_region
      %vm32 = vcmask 261120
      %33 = vst.msk [vmem:[#allocation2] sm:$0xff] %vm32, 0.0
      %34 = vst.msk [vmem:[#allocation2 + $0x8] sm:$0xff] %vm32, 0.0
    $region33: #{decoder_block_forward.15} parent=1 // pred_fallthru
      _
    %v35 = vld [vmem:[%s0] sm:$0xff]
    %v36 = vld [vmem:[%s0 + $0x8] sm:$0xff]
    %v37 = vpack.c.bf16 %v36, %v35
    %v38 = vld [vmem:[%s1] sm:$0xf]
    %v39 = vld [vmem:[%s1 + $0x4] sm:$0xf]
    %v40 = vld [vmem:[%s1 + $0x8] sm:$0xf]
    %v41 = vld [vmem:[%s1 + $0xc] sm:$0xf]
    %v42 = vld [vmem:[%s2] sm:$0x1]
    %v44 = vperm.slane %v42, 0
    %v50 = vunpack.c.l.b16 %v38
    %v51 = vunpack.c.l.b16 %v39
    %v52 = vunpack.c.l.b16 %v40
    %v53 = vunpack.c.l.b16 %v41
    %v54 = vpack.c.b16 %v51, %v50
    %v55 = vpack.c.b16 %v53, %v52
    %vm58 = vcmask 261120
    %v60 = vsel %vm58, %v37, 0
    %62 = vmatpush.bf16.msra.mxu0 0
    %63 = vmatpush.bf16.msra.mxu0 0
    %64 = vmatpush.bf16.msra.mxu0 0
    %65 = vmatpush.bf16.msra.mxu0 0
    %66 = vmatpush.bf16.msra.mxu0 0
    %67 = vmatpush.bf16.msra.mxu0 0
    %68 = vmatpush.bf16.msra.mxu0 %v55
    %69 = vmatpush.bf16.msra.mxu0 %v54
    %70 = vmatmul.bf16.gmra.mxu0 %v60
    %v71 = vpop.f32.mrf.mxu0
    %v72 = vadd.f32 %v44, %v71
    %v73 = vpop.f32.mrf.mxu0
    %v74 = vadd.f32 %v44, %v73
    %75 = vdwg.mxu0
    %v76 = vmax.f32 %v72, 0.0
    %v77 = vmax.f32 %v74, 0.0
    %v78 = vld [vmem:[#allocation2] sm:$0xff]
    %v79 = vld [vmem:[#allocation2 + $0x8] sm:$0xff]
    %v80 = vpack.c.bf16 %v77, %v76
    %v81 = vld [vmem:[%s3] sm:$0xf]
    %v82 = vld [vmem:[%s3 + $0x4] sm:$0xf]
    %v83 = vld [vmem:[%s3 + $0x8] sm:$0xf]
    %v84 = vld [vmem:[%s3 + $0xc] sm:$0xf]
    %v85 = vld [vmem:[%s3 + $0x10] sm:$0xf]
    %v86 = vld [vmem:[%s3 + $0x14] sm:$0xf]
    %v87 = vld [vmem:[%s3 + $0x18] sm:$0xf]
    %v88 = vld [vmem:[%s3 + $0x1c] sm:$0xf]
    %v97 = vunpack.c.l.b16 %v81
    %v98 = vunpack.c.l.b16 %v82
    %v99 = vunpack.c.l.b16 %v83
    %v100 = vunpack.c.l.b16 %v84
    %v101 = vunpack.c.l.b16 %v85
    %v102 = vunpack.c.l.b16 %v86
    %v103 = vunpack.c.l.b16 %v87
    %v104 = vunpack.c.l.b16 %v88
    %v105 = vpack.c.b16 %v98, %v97
    %v106 = vpack.c.b16 %v100, %v99
    %v107 = vpack.c.b16 %v102, %v101
    %v108 = vpack.c.b16 %v104, %v103
    %vm113 = vcmask 523264
    %v115 = vsel %vm113, %v80, 0
    %117 = vmatpush.bf16.msra.mxu0 0
    %118 = vmatpush.bf16.msra.mxu0 0
    %119 = vmatpush.bf16.msra.mxu0 0
    %120 = vmatpush.bf16.msra.mxu0 0
    %121 = vmatpush.bf16.msra.mxu0 %v108
    %122 = vmatpush.bf16.msra.mxu0 %v107
    %123 = vmatpush.bf16.msra.mxu0 %v106
    %124 = vmatpush.bf16.msra.mxu0 %v105
    %125 = vmatmul.bf16.gmra.mxu0 %v115
    %v126 = vpop.f32.mrf.mxu0
    %v127 = vadd.f32 0.0, %v126
    %v128 = vpop.f32.mrf.mxu0
    %v129 = vadd.f32 0.0, %v128
    %130 = vdwg.mxu0
    %v131 = vadd.f32 %v78, %v127
    %v132 = vadd.f32 %v79, %v129
    %133 = vst.msk [vmem:[#allocation2] sm:$0xff] %vm58, %v131
    %134 = vst.msk [vmem:[#allocation2 + $0x8] sm:$0xff] %vm58, %v132
    // Predicated region
    $region34: #{decoder_block_forward.15} parent=1 // pred_check
      %p135 = pneg %p28
    $region35: #{decoder_block_forward.15} parent=1 // pred_check_branch
      %137 = sbr.rel (%p135) target = $region37
    $region36: #{decoder_block_forward.15} parent=1 // pred_region
      %v138 = vld [vmem:[#allocation2] sm:$0xff]
      %v139 = vld [vmem:[#allocation2 + $0x8] sm:$0xff]
      %v140 = vld [vmem:[%s4] sm:$0x1]
      %v142 = vperm.slane %v140, 0
      %v144 = vadd.f32 %v138, %v142
      %v145 = vadd.f32 %v139, %v142
      %v146 = vadd.f32 %v144, %v35
      %v147 = vadd.f32 %v145, %v36
      %v148 = vld [vmem:[%s5] sm:$0x1]
      %v149 = vld [vmem:[%s6] sm:$0x1]
      %v150 = vsel %vm58, %v146, 0.0
      %151 = vadd.xlane.f32.xlu0 %v150
      %v152 = vpop.xlane.xlu0 %151
      %v153 = vsel %vm58, %v147, 0.0
      %154 = vadd.xlane.f32.xlu0 %v153
      %v155 = vpop.xlane.xlu0 %154
      %v156 = vrcp.pop 32.0
      %v157 = vmul.f32 32.0, %v156
      %v158 = vsub.f32 1.0, %v157
      %v159 = vmul.f32 %v156, %v158
      %v160 = vadd.f32 %v156, %v159
      %vm161 = vweird.f32 %v156
      %v162 = vsel %vm161, %v156, %v160
      %v163 = vmul.f32 %v152, %v162
      %v164 = vmul.f32 %v155, %v162
      %v165 = vsub.f32 %v146, %v163
      %v166 = vsub.f32 %v147, %v164
      %v167 = vmul.f32 %v165, %v165
      %v168 = vmul.f32 %v166, %v166
      %v169 = vsel %vm58, %v167, 0.0
      %170 = vadd.xlane.f32.xlu0 %v169
      %v171 = vpop.xlane.xlu0 %170
      %v172 = vsel %vm58, %v168, 0.0
      %173 = vadd.xlane.f32.xlu0 %v172
      %v174 = vpop.xlane.xlu0 %173
      %v175 = vmul.f32 %v171, %v162
      %v176 = vmul.f32 %v174, %v162
      %v177 = vadd.f32 %v175, 1e-05
      %v178 = vadd.f32 %v176, 1e-05
      %v179 = vrsqrt.pop %v177
      %v180 = vmul.f32 %v179, %v177
      %v181 = vmul.f32 %v180, %v179
      %v182 = vmul.f32 0.5, %v181
      %v183 = vsub.f32 1.5, %v182
      %v184 = vmul.f32 %v179, %v183
      %vm185 = vweird.f32 %v177
      %vm186 = vweird.f32 %v179
      %vm187 = vmor %vm185, %vm186
      %v188 = vsel %vm187, %v179, %v184
      %v189 = vrsqrt.pop %v178
      %v190 = vmul.f32 %v189, %v178
      %v191 = vmul.f32 %v190, %v189
      %v192 = vmul.f32 0.5, %v191
      %v193 = vsub.f32 1.5, %v192
      %v194 = vmul.f32 %v189, %v193
      %vm195 = vweird.f32 %v178
      %vm196 = vweird.f32 %v189
      %vm197 = vmor %vm195, %vm196
      %v198 = vsel %vm197, %v189, %v194
      %v199 = vmul.f32 %v165, %v188
      %v200 = vmul.f32 %v166, %v198
      %v202 = vperm.slane %v148, 0
      %v204 = vmul.f32 %v199, %v202
      %v205 = vmul.f32 %v200, %v202
      %v207 = vperm.slane %v149, 0
      %v209 = vadd.f32 %v204, %v207
      %v210 = vadd.f32 %v205, %v207
      %211 = vst.msk [vmem:[#allocation3] sm:$0xff] %vm58, %v209
      %212 = vst.msk [vmem:[#allocation3 + $0x8] sm:$0xff] %vm58, %v210
    $region37: #{decoder_block_forward.15} parent=1 // pred_fallthru
      _
    // Predicated region
    $region38: #{decoder_block_forward.15} parent=1 // pred_check
      _
    $region39: #{decoder_block_forward.15} parent=1 // pred_check_branch
      %214 = sbr.rel (0) target = $region41
    $region40: #{decoder_block_forward.15} parent=1 // pred_region
      %216 = vsyncadd [#allocation4], 0
      %s217 = sshll.u32 [#allocation3], 4
      %s218 = int_to_ptr.vmem [resolvable:$true] %s217
      %s219 = sshll.u32 %s7, 4
      %s220 = int_to_ptr.hbm [resolvable:$true] %s219
      %225 = dma.vmem_to_hbm [thread:$0]  %s218, 256, %s220, [#allocation4], 128, 128, 8
    $region41: #{decoder_block_forward.15} parent=1 // pred_fallthru
      _
    // Predicated region
    $region42: #{decoder_block_forward.15} parent=1 // pred_check
      _
    $region43: #{decoder_block_forward.15} parent=1 // pred_check_branch
      %227 = sbr.rel (0) target = $region45
    $region44: #{decoder_block_forward.15} parent=1 // pred_region
      %229 = dma.done [#allocation4], 256
    $region45: #{decoder_block_forward.15} parent=1 // pred_fallthru
      _
    %230 = vsyncpa [#allocation4], 1

</llo_original>
